<compile_context>
chip_gen: v5e
topology: v5e:2x2
jax: 0.10.0
libtpu: 0.0.40
codegen_flags: <defaults>
</compile_context>

<pallas_src>
import functools

import jax
import jax.numpy as jnp
from jax.experimental import pallas as pl
from jax.experimental.pallas import tpu as pltpu


# --------------------- fused all-layers encoder kernel --------------------- #

def _encoder_stack_kernel(x_ref, hs_ref, hb_ref,
                          wqkv_ref, bqkv_ref, wo_ref, bo_ref,
                          ln1g_ref, ln1b_ref,
                          wff1_ref, bff1_ref, wff2_ref, bff2_ref,
                          ln2g_ref, ln2b_ref,
                          o_ref, k_scr, v_scr, *, eps):
    f32, bf16 = jnp.float32, jnp.bfloat16
    layer = pl.program_id(1)

    # Layer 0: seed the VMEM-resident residual stream from the input block.
    @pl.when(layer == 0)
    def _():
        o_ref[...] = x_ref[...]

    L, tn, E = o_ref.shape          # L = image batch (= attention sequence length)
    Mb = L * tn                     # rows in this token block
    H = hs_ref.shape[1]
    Dh = E // H
    scale = 1.0 / float(Dh) ** 0.5

    x = o_ref[...].reshape(Mb, E)   # residual stream, f32 (clean view: tn % 8 == 0)
    head_sum = hs_ref[...]          # (E, H) bf16, block-diag per-head reducer
    head_bcast = hb_ref[...]        # (H, E) bf16, block-diag per-head broadcaster

    # ---- fused QKV projection: one lane-dense (Mb,E)@(E,3E) bf16 MXU matmul ----
    qkv = jnp.dot(x.astype(bf16), wqkv_ref[...],
                  preferred_element_type=f32) + bqkv_ref[...]
    q3 = (qkv[:, :E] * scale).reshape(L, tn, E)
    k_scr[...] = qkv[:, E:2 * E]
    v_scr[...] = qkv[:, 2 * E:]

    # ---- multi-head attention over the L sequence positions (online softmax) ----
    def att_step(j, carry):
        m, lsum, acc = carry
        row = pl.multiple_of(j * tn, 8)               # sublane-aligned slice start
        kj = k_scr[pl.ds(row, tn), :]                 # (tn, E)
        vj = v_scr[pl.ds(row, tn), :]                 # (tn, E)
        s = jnp.dot((q3 * kj[None, :, :]).reshape(Mb, E).astype(bf16),
                    head_sum, preferred_element_type=f32)        # (Mb, H)
        m_new = jnp.maximum(m, s)
        alpha = jnp.exp(m - m_new)
        p = jnp.exp(s - m_new)
        lsum = alpha * lsum + p
        alpha_e = jnp.dot(alpha.astype(bf16), head_bcast,
                          preferred_element_type=f32).reshape(L, tn, E)
        p_e = jnp.dot(p.astype(bf16), head_bcast,
                      preferred_element_type=f32).reshape(L, tn, E)
        acc = alpha_e * acc + p_e * vj[None, :, :]
        return m_new, lsum, acc

    m0 = jnp.full((Mb, H), -1e30, f32)
    l0 = jnp.zeros((Mb, H), f32)
    a0 = jnp.zeros((L, tn, E), f32)
    _, lsum, acc = jax.lax.fori_loop(0, L, att_step, (m0, l0, a0))

    lsum_e = jnp.dot(lsum.astype(bf16), head_bcast, preferred_element_type=f32)
    attn = acc.reshape(Mb, E) / lsum_e                # exact f32 normalization

    attn = jnp.dot(attn.astype(bf16), wo_ref[...],
                   preferred_element_type=f32) + bo_ref[...]

    # ---- residual + LayerNorm 1 (post-norm), fused ----
    h1 = x + attn
    mu1 = jnp.mean(h1, axis=-1, keepdims=True)
    c1 = h1 - mu1
    var1 = jnp.mean(c1 * c1, axis=-1, keepdims=True)
    x1 = c1 * jax.lax.rsqrt(var1 + eps) * ln1g_ref[...] + ln1b_ref[...]

    # ---- feed-forward: Linear -> ReLU -> Linear ----
    mid = jnp.dot(x1.astype(bf16), wff1_ref[...],
                  preferred_element_type=f32) + bff1_ref[...]
    mid = jnp.maximum(mid, 0.0)
    ffo = jnp.dot(mid.astype(bf16), wff2_ref[...],
                  preferred_element_type=f32) + bff2_ref[...]

    # ---- residual + LayerNorm 2, fused; write back into the resident output block ----
    h2 = x1 + ffo
    mu2 = jnp.mean(h2, axis=-1, keepdims=True)
    c2 = h2 - mu2
    var2 = jnp.mean(c2 * c2, axis=-1, keepdims=True)
    y = c2 * jax.lax.rsqrt(var2 + eps) * ln2g_ref[...] + ln2b_ref[...]
    o_ref[...] = y.reshape(L, tn, E)


def _token_tile(n, cap=256):
    """Largest multiple-of-8 divisor of n that is <= cap (n itself if n <= cap)."""
    if n <= cap:
        return n
    for t in range(cap - cap % 8, 7, -8):
        if n % t == 0:
            return t
    return 8


def encoder_stack(x, params, *, eps=1e-5, token_tile_cap=256):
    """All encoder layers in one pallas_call; activation stays VMEM-resident."""
    B, Np, E = x.shape
    stk = params["stack"]
    num_layers = stk["w_qkv"].shape[0]
    ff = stk["w_ff1"].shape[2]
    H = params["head_sum"].shape[1]

    tn = _token_tile(Np, token_tile_cap)   # tokens are independent -> parallel axis
    T = Np // tn

    act_spec = pl.BlockSpec((B, tn, E), lambda t, l: (0, t, 0))
    const2 = lambda t, l: (0, 0)

    def wspec(*shape):
        zeros = (0,) * len(shape)
        return pl.BlockSpec((None,) + tuple(shape), lambda t, l, z=zeros: (l,) + z)

    return pl.pallas_call(
        functools.partial(_encoder_stack_kernel, eps=eps),
        out_shape=jax.ShapeDtypeStruct((B, Np, E), jnp.float32),
        grid=(T, num_layers),
        in_specs=[
            act_spec,                                   # x (read at layer 0 only)
            pl.BlockSpec((E, H), const2),               # head_sum  (bf16)
            pl.BlockSpec((H, E), const2),               # head_bcast (bf16)
            wspec(E, 3 * E), wspec(1, 3 * E),           # fused QKV weight / bias
            wspec(E, E), wspec(1, E),                   # out-proj
            wspec(1, E), wspec(1, E),                   # LN1 gamma / beta
            wspec(E, ff), wspec(1, ff),                 # FF1
            wspec(ff, E), wspec(1, E),                  # FF2
            wspec(1, E), wspec(1, E),                   # LN2 gamma / beta
        ],
        out_specs=act_spec,
        scratch_shapes=[pltpu.VMEM((B * tn, E), jnp.float32),   # K
                        pltpu.VMEM((B * tn, E), jnp.float32)],  # V
        compiler_params=pltpu.CompilerParams(
            dimension_semantics=("parallel", "arbitrary")),
    )(x, params["head_sum"], params["head_bcast"],
      stk["w_qkv"], stk["b_qkv"], stk["w_o"], stk["b_o"],
      stk["ln1_g"], stk["ln1_b"],
      stk["w_ff1"], stk["b_ff1"], stk["w_ff2"], stk["b_ff2"],
      stk["ln2_g"], stk["ln2_b"])


# -------------------------- small helper kernels --------------------------- #

def _linear_kernel(x_ref, w_ref, b_ref, o_ref):
    o_ref[...] = jnp.dot(x_ref[...].astype(jnp.bfloat16), w_ref[...],
                         preferred_element_type=jnp.float32) + b_ref[...]


def linear(x, w_bf16, b, *, block_rows=512):
    """(M,K)@(K,N)+b with bf16 weights (stored bf16 at init), row-tiled parallel grid."""
    M, K = x.shape
    N = w_bf16.shape[1]
    bm = min(M, block_rows)
    g = pl.cdiv(M, bm)
    # NOTE: output last dim N=E (<128 lanes) -> partial stores; negligible here.
    return pl.pallas_call(
        _linear_kernel,
        out_shape=jax.ShapeDtypeStruct((M, N), jnp.float32),
        grid=(g,),
        in_specs=[pl.BlockSpec((bm, K), lambda i: (i, 0)),
                  pl.BlockSpec((K, N), lambda i: (0, 0)),
                  pl.BlockSpec((1, N), lambda i: (0, 0))],
        out_specs=pl.BlockSpec((bm, N), lambda i: (i, 0)),
        compiler_params=pltpu.CompilerParams(
            dimension_semantics=("parallel",)),
    )(x, w_bf16, b)


def _ln_linear_kernel(x_ref, g_ref, bb_ref, w_ref, b_ref, o_ref, *, eps):
    x = x_ref[...]
    mu = jnp.mean(x, axis=-1, keepdims=True)
    c = x - mu
    var = jnp.mean(c * c, axis=-1, keepdims=True)
    xn = c * jax.lax.rsqrt(var + eps) * g_ref[...] + bb_ref[...]
    o_ref[...] = jnp.dot(xn.astype(jnp.bfloat16), w_ref[...],
                         preferred_element_type=jnp.float32) + b_ref[...]


def ln_linear(x, gamma, beta, w_bf16, b, *, eps=1e-5):
    """Fused classification head: LayerNorm -> Linear (single VMEM block)."""
    M, E = x.shape
    N = w_bf16.shape[1]
    # NOTE: (M, num_classes) output is a <128-lane masked store; negligible here.
    return pl.pallas_call(
        functools.partial(_ln_linear_kernel, eps=eps),
        out_shape=jax.ShapeDtypeStruct((M, N), jnp.float32),
        grid=(1,),
        in_specs=[
            pl.BlockSpec((M, E), lambda i: (0, 0)),
            pl.BlockSpec((1, E), lambda i: (0, 0)),
            pl.BlockSpec((1, E), lambda i: (0, 0)),
            pl.BlockSpec((E, N), lambda i: (0, 0)),
            pl.BlockSpec((1, N), lambda i: (0, 0)),
        ],
        out_specs=pl.BlockSpec((M, N), lambda i: (0, 0)),
    )(x, gamma, beta, w_bf16, b)


# ------------------------------ params / glue ------------------------------ #

def init_vit_params(key, *, img_size, patch_size, embed_dim, num_heads,
                    num_layers, mlp_ratio, num_classes):
    E, H = embed_dim, num_heads
    Dh = E // H
    P = (img_size // patch_size) ** 2
    Nb = 1 + P
    Np = ((Nb + 7) // 8) * 8                 # token axis padded to a sublane multiple
    ff = int(E * mlp_ratio)
    Kp = 3 * patch_size * patch_size
    std = 0.02
    f32, bf16 = jnp.float32, jnp.bfloat16
    ks = jax.random.split(key, 16)

    # Constant block-diagonal per-head reduce/broadcast matrices (bf16 MXU operands).
    he = jnp.arange(E) // Dh
    head_sum = (he[:, None] == jnp.arange(H)[None, :]).astype(bf16)      # (E, H)

    pos = std * jax.random.normal(ks[1], (1, Nb, E), f32)
    pos_emb = jnp.zeros((1, Np, E), f32).at[:, :Nb, :].set(pos)

    params = {
        "patch_w_mat": (std * jax.random.normal(ks[0], (Kp, E), f32)).astype(bf16),
        "patch_b": std * jax.random.normal(ks[2], (1, E), f32),
        "cls_token": std * jax.random.normal(ks[3], (1, 1, E), f32),
        "pos_emb": pos_emb,
        "head_sum": head_sum,
        "head_bcast": head_sum.T,                                        # (H, E)
        "head_ln_g": jnp.ones((1, E), f32),
        "head_ln_b": jnp.zeros((1, E), f32),
        "head_w": (std * jax.random.normal(ks[4], (E, num_classes), f32)).astype(bf16),
        "head_b": std * jax.random.normal(ks[5], (1, num_classes), f32),
    }

    Lyr = num_layers
    params["stack"] = dict(
        w_qkv=(std * jax.random.normal(ks[6], (Lyr, E, 3 * E), f32)).astype(bf16),
        b_qkv=std * jax.random.normal(ks[7], (Lyr, 1, 3 * E), f32),
        w_o=(std * jax.random.normal(ks[8], (Lyr, E, E), f32)).astype(bf16),
        b_o=std * jax.random.normal(ks[9], (Lyr, 1, E), f32),
        ln1_g=jnp.ones((Lyr, 1, E), f32),
        ln1_b=jnp.zeros((Lyr, 1, E), f32),
        w_ff1=(std * jax.random.normal(ks[10], (Lyr, E, ff), f32)).astype(bf16),
        b_ff1=std * jax.random.normal(ks[11], (Lyr, 1, ff), f32),
        w_ff2=(std * jax.random.normal(ks[12], (Lyr, ff, E), f32)).astype(bf16),
        b_ff2=std * jax.random.normal(ks[13], (Lyr, 1, E), f32),
        ln2_g=jnp.ones((Lyr, 1, E), f32),
        ln2_b=jnp.zeros((Lyr, 1, E), f32),
    )
    return params


def vit_forward(params, x_nchw, *, patch_size):
    B, C, Himg, Wimg = x_nchw.shape
    E = params["patch_b"].shape[1]
    nh, nw = Himg // patch_size, Wimg // patch_size
    P = nh * nw
    Nb = 1 + P
    Np = params["pos_emb"].shape[1]

    # --- patch embedding: Conv2d(kernel=stride=patch) == im2col + fused matmul ---
    xp = x_nchw.reshape(B, C, nh, patch_size, nw, patch_size)
    xp = xp.transpose(0, 2, 4, 1, 3, 5).reshape(B * P, C * patch_size * patch_size)
    tokens = linear(xp, params["patch_w_mat"], params["patch_b"]).reshape(B, P, E)

    # --- prepend cls token, zero-pad the token axis to Np, add position embeddings ---
    cls = jnp.broadcast_to(params["cls_token"], (B, 1, E))
    pad = jnp.zeros((B, Np - Nb, E), jnp.float32)
    x = jnp.concatenate([cls, tokens, pad], axis=1) + params["pos_emb"]   # (B, Np, E)

    # --- whole encoder stack in a single fused pallas_call ---
    x = encoder_stack(x, params)

    # --- classification head: cls token of every image -> fused LayerNorm+Linear ---
    cls_out = x[:, 0, :]                                                  # (B, E)
    return ln_linear(cls_out, params["head_ln_g"], params["head_ln_b"],
                     params["head_w"], params["head_b"])                  # (B, classes)


# --------------------------------- main ------------------------------------ #

if __name__ == "__main__":
    cfg = dict(img_size=32, patch_size=8, embed_dim=64, num_heads=4,
               num_layers=2, mlp_ratio=4.0, num_classes=10)

    key = jax.random.PRNGKey(0)
    pkey, xkey = jax.random.split(key)
    params = init_vit_params(pkey, **cfg)

    x = jax.random.normal(xkey, (2, 3, cfg["img_size"], cfg["img_size"]), jnp.float32)

    fwd = jax.jit(functools.partial(vit_forward, patch_size=cfg["patch_size"]))
    out = fwd(params, x)
    jax.block_until_ready(out)
    assert out.shape == (2, cfg["num_classes"]) and out.dtype == jnp.float32
    assert bool(jnp.all(jnp.isfinite(out)))
    print("KERNEL_OK")
</pallas_src>

<mosaic_0001>
module attributes {stable_mosaic.version = 11 : i64} {
  func.func @_linear_kernel(%arg0: i32, %arg1: memref<32x192xf32, #tpu.memory_space<vmem>>, %arg2: memref<192x64xbf16, #tpu.memory_space<vmem>>, %arg3: memref<1x64xf32, #tpu.memory_space<vmem>>, %arg4: memref<32x64xf32, #tpu.memory_space<vmem>>) attributes {dimension_semantics = [#tpu.dimension_semantics<parallel>], iteration_bounds = array<i64: 1>, scalar_prefetch = 0 : i64, scratch_operands = 0 : i64, tpu.core_type = #tpu.core_type<tc>, window_params = [{transform_indices = @transform_0, window_bounds = array<i64: 32, 192>}, {pipeline_mode = #tpu.pipeline_mode<synchronous>, transform_indices = @transform_1, window_bounds = array<i64: 192, 64>}, {pipeline_mode = #tpu.pipeline_mode<synchronous>, transform_indices = @transform_2, window_bounds = array<i64: 1, 64>}, {transform_indices = @transform_3, window_bounds = array<i64: 32, 64>}]} {
    %c0 = arith.constant 0 : index
    %c0_0 = arith.constant 0 : index
    %0 = vector.load %arg1[%c0, %c0_0] : memref<32x192xf32, #tpu.memory_space<vmem>>, vector<32x192xf32>
    %1 = arith.truncf %0 : vector<32x192xf32> to vector<32x192xbf16>
    %c0_1 = arith.constant 0 : index
    %c0_2 = arith.constant 0 : index
    %2 = vector.load %arg2[%c0_1, %c0_2] : memref<192x64xbf16, #tpu.memory_space<vmem>>, vector<192x64xbf16>
    %cst = arith.constant dense<0.000000e+00> : vector<32x64xf32>
    %3 = tpu.matmul %1, %2, %cst {dimension_numbers = #tpu.dot_dimension_numbers<[1], [0], [0], [1], [0, 0, 1, 1], [], []>} : vector<32x192xbf16>, vector<192x64xbf16>, vector<32x64xf32> -> vector<32x64xf32>
    %c0_3 = arith.constant 0 : index
    %c0_4 = arith.constant 0 : index
    %4 = vector.load %arg3[%c0_3, %c0_4] : memref<1x64xf32, #tpu.memory_space<vmem>>, vector<1x64xf32>
    %5 = vector.broadcast %4 : vector<1x64xf32> to vector<32x64xf32>
    %6 = arith.addf %3, %5 : vector<32x64xf32>
    %c0_5 = arith.constant 0 : index
    %c0_6 = arith.constant 0 : index
    %7 = vector.load %arg4[%c0_5, %c0_6] : memref<32x64xf32, #tpu.memory_space<vmem>>, vector<32x64xf32>
    tpu.vector_store %arg4[%c0_5, %c0_6], %6 {strides = array<i32>} : memref<32x64xf32, #tpu.memory_space<vmem>>, vector<32x64xf32>,
    return
  }
  func.func @transform_0(%arg0: i32) -> (i32, i32) {
    %c0_i32 = arith.constant 0 : i32
    %c0_i32_0 = arith.constant 0 : i32
    return %arg0, %c0_i32 : i32, i32
  }
  func.func @transform_1(%arg0: i32) -> (i32, i32) {
    %c0_i32 = arith.constant 0 : i32
    %c0_i32_0 = arith.constant 0 : i32
    %c0_i32_1 = arith.constant 0 : i32
    return %c0_i32, %c0_i32_0 : i32, i32
  }
  func.func @transform_2(%arg0: i32) -> (i32, i32) {
    %c0_i32 = arith.constant 0 : i32
    %c0_i32_0 = arith.constant 0 : i32
    %c0_i32_1 = arith.constant 0 : i32
    return %c0_i32, %c0_i32_0 : i32, i32
  }
  func.func @transform_3(%arg0: i32) -> (i32, i32) {
    %c0_i32 = arith.constant 0 : i32
    %c0_i32_0 = arith.constant 0 : i32
    return %arg0, %c0_i32 : i32, i32
  }
}

module attributes {stable_mosaic.version = 11 : i64} {
  func.func @_encoder_stack_kernel(%arg0: i32, %arg1: i32, %arg2: memref<2x24x64xf32, #tpu.memory_space<vmem>>, %arg3: memref<64x4xbf16, #tpu.memory_space<vmem>>, %arg4: memref<4x64xbf16, #tpu.memory_space<vmem>>, %arg5: memref<1x64x192xbf16, #tpu.memory_space<vmem>>, %arg6: memref<1x1x192xf32, #tpu.memory_space<vmem>>, %arg7: memref<1x64x64xbf16, #tpu.memory_space<vmem>>, %arg8: memref<1x1x64xf32, #tpu.memory_space<vmem>>, %arg9: memref<1x1x64xf32, #tpu.memory_space<vmem>>, %arg10: memref<1x1x64xf32, #tpu.memory_space<vmem>>, %arg11: memref<1x64x256xbf16, #tpu.memory_space<vmem>>, %arg12: memref<1x1x256xf32, #tpu.memory_space<vmem>>, %arg13: memref<1x256x64xbf16, #tpu.memory_space<vmem>>, %arg14: memref<1x1x64xf32, #tpu.memory_space<vmem>>, %arg15: memref<1x1x64xf32, #tpu.memory_space<vmem>>, %arg16: memref<1x1x64xf32, #tpu.memory_space<vmem>>, %arg17: memref<2x24x64xf32, #tpu.memory_space<vmem>>, %arg18: memref<48x64xf32, #tpu.memory_space<vmem>>, %arg19: memref<48x64xf32, #tpu.memory_space<vmem>>) attributes {dimension_semantics = [#tpu.dimension_semantics<parallel>, #tpu.dimension_semantics<arbitrary>], iteration_bounds = array<i64: 1, 2>, scalar_prefetch = 0 : i64, scratch_operands = 2 : i64, tpu.core_type = #tpu.core_type<tc>, window_params = [{transform_indices = @transform_0, window_bounds = array<i64: 2, 24, 64>}, {pipeline_mode = #tpu.pipeline_mode<synchronous>, transform_indices = @transform_1, window_bounds = array<i64: 64, 4>}, {pipeline_mode = #tpu.pipeline_mode<synchronous>, transform_indices = @transform_2, window_bounds = array<i64: 4, 64>}, {transform_indices = @transform_3, window_bounds = array<i64: 1, 64, 192>}, {transform_indices = @transform_4, window_bounds = array<i64: 1, 1, 192>}, {transform_indices = @transform_5, window_bounds = array<i64: 1, 64, 64>}, {transform_indices = @transform_6, window_bounds = array<i64: 1, 1, 64>}, {transform_indices = @transform_7, window_bounds = array<i64: 1, 1, 64>}, {transform_indices = @transform_8, window_bounds = array<i64: 1, 1, 64>}, {transform_indices = @transform_9, window_bounds = array<i64: 1, 64, 256>}, {transform_indices = @transform_10, window_bounds = array<i64: 1, 1, 256>}, {transform_indices = @transform_11, window_bounds = array<i64: 1, 256, 64>}, {transform_indices = @transform_12, window_bounds = array<i64: 1, 1, 64>}, {transform_indices = @transform_13, window_bounds = array<i64: 1, 1, 64>}, {transform_indices = @transform_14, window_bounds = array<i64: 1, 1, 64>}, {transform_indices = @transform_15, window_bounds = array<i64: 2, 24, 64>}]} {
    %c0_i32 = arith.constant 0 : i32
    %0 = arith.cmpi eq, %arg1, %c0_i32 : i32
    %1 = arith.extui %0 : i1 to i32
    %c0_i32_0 = arith.constant 0 : i32
    %2 = arith.cmpi ne, %1, %c0_i32_0 : i32
    scf.if %2 {
      %c0_71 = arith.constant 0 : index
      %c0_72 = arith.constant 0 : index
      %c0_73 = arith.constant 0 : index
      %110 = vector.load %arg2[%c0_71, %c0_72, %c0_73] : memref<2x24x64xf32, #tpu.memory_space<vmem>>, vector<2x24x64xf32>
      %c0_74 = arith.constant 0 : index
      %c0_75 = arith.constant 0 : index
      %c0_76 = arith.constant 0 : index
      %111 = vector.load %arg17[%c0_74, %c0_75, %c0_76] : memref<2x24x64xf32, #tpu.memory_space<vmem>>, vector<2x24x64xf32>
      tpu.vector_store %arg17[%c0_74, %c0_75, %c0_76], %110 {strides = array<i32>} : memref<2x24x64xf32, #tpu.memory_space<vmem>>, vector<2x24x64xf32>,
    } else {
    }
    %c0 = arith.constant 0 : index
    %c0_1 = arith.constant 0 : index
    %c0_2 = arith.constant 0 : index
    %3 = vector.load %arg17[%c0, %c0_1, %c0_2] : memref<2x24x64xf32, #tpu.memory_space<vmem>>, vector<2x24x64xf32>
    %4 = vector.shape_cast %3 : vector<2x24x64xf32> to vector<48x64xf32>
    %c0_3 = arith.constant 0 : index
    %c0_4 = arith.constant 0 : index
    %5 = vector.load %arg3[%c0_3, %c0_4] : memref<64x4xbf16, #tpu.memory_space<vmem>>, vector<64x4xbf16>
    %c0_5 = arith.constant 0 : index
    %c0_6 = arith.constant 0 : index
    %6 = vector.load %arg4[%c0_5, %c0_6] : memref<4x64xbf16, #tpu.memory_space<vmem>>, vector<4x64xbf16>
    %7 = arith.truncf %4 : vector<48x64xf32> to vector<48x64xbf16>
    %c0_7 = arith.constant 0 : index
    %c0_8 = arith.constant 0 : index
    %c0_9 = arith.constant 0 : index
    %8 = vector.load %arg5[%c0_7, %c0_8, %c0_9] : memref<1x64x192xbf16, #tpu.memory_space<vmem>>, vector<1x64x192xbf16>
    %9 = vector.shape_cast %8 : vector<1x64x192xbf16> to vector<64x192xbf16>
    %cst = arith.constant dense<0.000000e+00> : vector<48x192xf32>
    %10 = tpu.matmul %7, %9, %cst {dimension_numbers = #tpu.dot_dimension_numbers<[1], [0], [0], [1], [0, 0, 1, 1], [], []>} : vector<48x64xbf16>, vector<64x192xbf16>, vector<48x192xf32> -> vector<48x192xf32>
    %c0_10 = arith.constant 0 : index
    %c0_11 = arith.constant 0 : index
    %c0_12 = arith.constant 0 : index
    %11 = vector.load %arg6[%c0_10, %c0_11, %c0_12] : memref<1x1x192xf32, #tpu.memory_space<vmem>>, vector<1x1x192xf32>
    %12 = vector.shape_cast %11 : vector<1x1x192xf32> to vector<1x192xf32>
    %13 = vector.broadcast %12 : vector<1x192xf32> to vector<48x192xf32>
    %14 = arith.addf %10, %13 : vector<48x192xf32>
    %15 = vector.extract_strided_slice %14 {offsets = [0, 0], sizes = [48, 64], strides = [1, 1]} : vector<48x192xf32> to vector<48x64xf32>
    %cst_13 = arith.constant 2.500000e-01 : f32
    %16 = vector.broadcast %cst_13 : f32 to vector<48x64xf32>
    %17 = arith.mulf %15, %16 : vector<48x64xf32>
    %18 = vector.shape_cast %17 : vector<48x64xf32> to vector<2x24x64xf32>
    %19 = vector.extract_strided_slice %14 {offsets = [0, 64], sizes = [48, 64], strides = [1, 1]} : vector<48x192xf32> to vector<48x64xf32>
    %c0_14 = arith.constant 0 : index
    %c0_15 = arith.constant 0 : index
    %20 = vector.load %arg18[%c0_14, %c0_15] : memref<48x64xf32, #tpu.memory_space<vmem>>, vector<48x64xf32>
    tpu.vector_store %arg18[%c0_14, %c0_15], %19 {strides = array<i32>} : memref<48x64xf32, #tpu.memory_space<vmem>>, vector<48x64xf32>,
    %21 = vector.extract_strided_slice %14 {offsets = [0, 128], sizes = [48, 64], strides = [1, 1]} : vector<48x192xf32> to vector<48x64xf32>
    %c0_16 = arith.constant 0 : index
    %c0_17 = arith.constant 0 : index
    %22 = vector.load %arg19[%c0_16, %c0_17] : memref<48x64xf32, #tpu.memory_space<vmem>>, vector<48x64xf32>
    tpu.vector_store %arg19[%c0_16, %c0_17], %21 {strides = array<i32>} : memref<48x64xf32, #tpu.memory_space<vmem>>, vector<48x64xf32>,
    %cst_18 = arith.constant -1.000000e+30 : f32
    %23 = vector.broadcast %cst_18 : f32 to vector<48x4xf32>
    %cst_19 = arith.constant 0.000000e+00 : f32
    %24 = vector.broadcast %cst_19 : f32 to vector<48x4xf32>
    %cst_20 = arith.constant 0.000000e+00 : f32
    %25 = vector.broadcast %cst_20 : f32 to vector<2x24x64xf32>
    %c0_i32_21 = arith.constant 0 : i32
    %c2_i32 = arith.constant 2 : i32
    %26 = arith.addi %c0_i32_21, %c2_i32 : i32
    %c1_i32 = arith.constant 1 : i32
    %27:3 = scf.for %arg20 = %c0_i32_21 to %26 step %c1_i32 iter_args(%arg21 = %23, %arg22 = %24, %arg23 = %25) -> (vector<48x4xf32>, vector<48x4xf32>, vector<2x24x64xf32>)  : i32 {
      %c24_i32 = arith.constant 24 : i32
      %110 = arith.muli %arg20, %c24_i32 : i32
      %111 = tpu.assume_multiple %110, 8 : i32
      %112 = arith.index_cast %111 : i32 to index
      %c0_71 = arith.constant 0 : index
      %113 = vector.load %arg18[%112, %c0_71] : memref<48x64xf32, #tpu.memory_space<vmem>>, vector<24x64xf32>
      %114 = arith.index_cast %111 : i32 to index
      %c0_72 = arith.constant 0 : index
      %115 = vector.load %arg19[%114, %c0_72] : memref<48x64xf32, #tpu.memory_space<vmem>>, vector<24x64xf32>
      %116 = vector.shape_cast %113 : vector<24x64xf32> to vector<1x24x64xf32>
      %117 = vector.broadcast %116 : vector<1x24x64xf32> to vector<2x24x64xf32>
      %118 = arith.mulf %18, %117 : vector<2x24x64xf32>
      %119 = vector.shape_cast %118 : vector<2x24x64xf32> to vector<48x64xf32>
      %120 = arith.truncf %119 : vector<48x64xf32> to vector<48x64xbf16>
      %cst_73 = arith.constant dense<0.000000e+00> : vector<48x4xf32>
      %121 = tpu.matmul %120, %5, %cst_73 {dimension_numbers = #tpu.dot_dimension_numbers<[1], [0], [0], [1], [0, 0, 1, 1], [], []>} : vector<48x64xbf16>, vector<64x4xbf16>, vector<48x4xf32> -> vector<48x4xf32>
      %122 = arith.maximumf %arg21, %121 : vector<48x4xf32>
      %123 = arith.subf %arg21, %122 : vector<48x4xf32>
      %124 = math.exp %123 : vector<48x4xf32>
      %125 = arith.subf %121, %122 : vector<48x4xf32>
      %126 = math.exp %125 : vector<48x4xf32>
      %127 = arith.mulf %124, %arg22 : vector<48x4xf32>
      %128 = arith.addf %127, %126 : vector<48x4xf32>
      %129 = arith.truncf %124 : vector<48x4xf32> to vector<48x4xbf16>
      %cst_74 = arith.constant dense<0.000000e+00> : vector<48x64xf32>
      %130 = tpu.matmul %129, %6, %cst_74 {dimension_numbers = #tpu.dot_dimension_numbers<[1], [0], [0], [1], [0, 0, 1, 1], [], []>} : vector<48x4xbf16>, vector<4x64xbf16>, vector<48x64xf32> -> vector<48x64xf32>
      %131 = vector.shape_cast %130 : vector<48x64xf32> to vector<2x24x64xf32>
      %132 = arith.truncf %126 : vector<48x4xf32> to vector<48x4xbf16>
      %cst_75 = arith.constant dense<0.000000e+00> : vector<48x64xf32>
      %133 = tpu.matmul %132, %6, %cst_75 {dimension_numbers = #tpu.dot_dimension_numbers<[1], [0], [0], [1], [0, 0, 1, 1], [], []>} : vector<48x4xbf16>, vector<4x64xbf16>, vector<48x64xf32> -> vector<48x64xf32>
      %134 = vector.shape_cast %133 : vector<48x64xf32> to vector<2x24x64xf32>
      %135 = arith.mulf %131, %arg23 : vector<2x24x64xf32>
      %136 = vector.shape_cast %115 : vector<24x64xf32> to vector<1x24x64xf32>
      %137 = vector.broadcast %136 : vector<1x24x64xf32> to vector<2x24x64xf32>
      %138 = arith.mulf %134, %137 : vector<2x24x64xf32>
      %139 = arith.addf %135, %138 : vector<2x24x64xf32>
      scf.yield %122, %128, %139 : vector<48x4xf32>, vector<48x4xf32>, vector<2x24x64xf32>
    }
    %c2_i32_22 = arith.constant 2 : i32
    %28 = arith.truncf %27#1 : vector<48x4xf32> to vector<48x4xbf16>
    %cst_23 = arith.constant dense<0.000000e+00> : vector<48x64xf32>
    %29 = tpu.matmul %28, %6, %cst_23 {dimension_numbers = #tpu.dot_dimension_numbers<[1], [0], [0], [1], [0, 0, 1, 1], [], []>} : vector<48x4xbf16>, vector<4x64xbf16>, vector<48x64xf32> -> vector<48x64xf32>
    %30 = vector.shape_cast %27#2 : vector<2x24x64xf32> to vector<48x64xf32>
    %31 = arith.divf %30, %29 : vector<48x64xf32>
    %32 = arith.truncf %31 : vector<48x64xf32> to vector<48x64xbf16>
    %c0_24 = arith.constant 0 : index
    %c0_25 = arith.constant 0 : index
    %c0_26 = arith.constant 0 : index
    %33 = vector.load %arg7[%c0_24, %c0_25, %c0_26] : memref<1x64x64xbf16, #tpu.memory_space<vmem>>, vector<1x64x64xbf16>
    %34 = vector.shape_cast %33 : vector<1x64x64xbf16> to vector<64x64xbf16>
    %cst_27 = arith.constant dense<0.000000e+00> : vector<48x64xf32>
    %35 = tpu.matmul %32, %34, %cst_27 {dimension_numbers = #tpu.dot_dimension_numbers<[1], [0], [0], [1], [0, 0, 1, 1], [], []>} : vector<48x64xbf16>, vector<64x64xbf16>, vector<48x64xf32> -> vector<48x64xf32>
    %c0_28 = arith.constant 0 : index
    %c0_29 = arith.constant 0 : index
    %c0_30 = arith.constant 0 : index
    %36 = vector.load %arg8[%c0_28, %c0_29, %c0_30] : memref<1x1x64xf32, #tpu.memory_space<vmem>>, vector<1x1x64xf32>
    %37 = vector.shape_cast %36 : vector<1x1x64xf32> to vector<1x64xf32>
    %38 = vector.broadcast %37 : vector<1x64xf32> to vector<48x64xf32>
    %39 = arith.addf %35, %38 : vector<48x64xf32>
    %40 = arith.addf %4, %39 : vector<48x64xf32>
    %cst_31 = arith.constant dense<0.000000e+00> : vector<48xf32>
    %41 = vector.multi_reduction <add>, %40, %cst_31 [1] : vector<48x64xf32> to vector<48xf32>
    %42 = vector.shape_cast %41 : vector<48xf32> to vector<48x1xf32>
    %cst_32 = arith.constant 6.400000e+01 : f32
    %43 = vector.broadcast %cst_32 : f32 to vector<48x1xf32>
    %44 = arith.divf %42, %43 : vector<48x1xf32>
    %45 = vector.broadcast %44 : vector<48x1xf32> to vector<48x64xf32>
    %46 = arith.subf %40, %45 : vector<48x64xf32>
    %47 = arith.mulf %46, %46 : vector<48x64xf32>
    %cst_33 = arith.constant dense<0.000000e+00> : vector<48xf32>
    %48 = vector.multi_reduction <add>, %47, %cst_33 [1] : vector<48x64xf32> to vector<48xf32>
    %49 = vector.shape_cast %48 : vector<48xf32> to vector<48x1xf32>
    %cst_34 = arith.constant 6.400000e+01 : f32
    %50 = vector.broadcast %cst_34 : f32 to vector<48x1xf32>
    %51 = arith.divf %49, %50 : vector<48x1xf32>
    %cst_35 = arith.constant 9.99999974E-6 : f32
    %52 = vector.broadcast %cst_35 : f32 to vector<48x1xf32>
    %53 = arith.addf %51, %52 : vector<48x1xf32>
    %54 = math.rsqrt %53 : vector<48x1xf32>
    %55 = vector.broadcast %54 : vector<48x1xf32> to vector<48x64xf32>
    %56 = arith.mulf %46, %55 : vector<48x64xf32>
    %c0_36 = arith.constant 0 : index
    %c0_37 = arith.constant 0 : index
    %c0_38 = arith.constant 0 : index
    %57 = vector.load %arg9[%c0_36, %c0_37, %c0_38] : memref<1x1x64xf32, #tpu.memory_space<vmem>>, vector<1x1x64xf32>
    %58 = vector.shape_cast %57 : vector<1x1x64xf32> to vector<1x64xf32>
    %59 = vector.broadcast %58 : vector<1x64xf32> to vector<48x64xf32>
    %60 = arith.mulf %56, %59 : vector<48x64xf32>
    %c0_39 = arith.constant 0 : index
    %c0_40 = arith.constant 0 : index
    %c0_41 = arith.constant 0 : index
    %61 = vector.load %arg10[%c0_39, %c0_40, %c0_41] : memref<1x1x64xf32, #tpu.memory_space<vmem>>, vector<1x1x64xf32>
    %62 = vector.shape_cast %61 : vector<1x1x64xf32> to vector<1x64xf32>
    %63 = vector.broadcast %62 : vector<1x64xf32> to vector<48x64xf32>
    %64 = arith.addf %60, %63 : vector<48x64xf32>
    %65 = arith.truncf %64 : vector<48x64xf32> to vector<48x64xbf16>
    %c0_42 = arith.constant 0 : index
    %c0_43 = arith.constant 0 : index
    %c0_44 = arith.constant 0 : index
    %66 = vector.load %arg11[%c0_42, %c0_43, %c0_44] : memref<1x64x256xbf16, #tpu.memory_space<vmem>>, vector<1x64x256xbf16>
    %67 = vector.shape_cast %66 : vector<1x64x256xbf16> to vector<64x256xbf16>
    %cst_45 = arith.constant dense<0.000000e+00> : vector<48x256xf32>
    %68 = tpu.matmul %65, %67, %cst_45 {dimension_numbers = #tpu.dot_dimension_numbers<[1], [0], [0], [1], [0, 0, 1, 1], [], []>} : vector<48x64xbf16>, vector<64x256xbf16>, vector<48x256xf32> -> vector<48x256xf32>
    %c0_46 = arith.constant 0 : index
    %c0_47 = arith.constant 0 : index
    %c0_48 = arith.constant 0 : index
    %69 = vector.load %arg12[%c0_46, %c0_47, %c0_48] : memref<1x1x256xf32, #tpu.memory_space<vmem>>, vector<1x1x256xf32>
    %70 = vector.shape_cast %69 : vector<1x1x256xf32> to vector<1x256xf32>
    %71 = vector.broadcast %70 : vector<1x256xf32> to vector<48x256xf32>
    %72 = arith.addf %68, %71 : vector<48x256xf32>
    %cst_49 = arith.constant 0.000000e+00 : f32
    %73 = vector.broadcast %cst_49 : f32 to vector<48x256xf32>
    %74 = arith.maximumf %72, %73 : vector<48x256xf32>
    %75 = arith.truncf %74 : vector<48x256xf32> to vector<48x256xbf16>
    %c0_50 = arith.constant 0 : index
    %c0_51 = arith.constant 0 : index
    %c0_52 = arith.constant 0 : index
    %76 = vector.load %arg13[%c0_50, %c0_51, %c0_52] : memref<1x256x64xbf16, #tpu.memory_space<vmem>>, vector<1x256x64xbf16>
    %77 = vector.shape_cast %76 : vector<1x256x64xbf16> to vector<256x64xbf16>
    %cst_53 = arith.constant dense<0.000000e+00> : vector<48x64xf32>
    %78 = tpu.matmul %75, %77, %cst_53 {dimension_numbers = #tpu.dot_dimension_numbers<[1], [0], [0], [1], [0, 0, 1, 1], [], []>} : vector<48x256xbf16>, vector<256x64xbf16>, vector<48x64xf32> -> vector<48x64xf32>
    %c0_54 = arith.constant 0 : index
    %c0_55 = arith.constant 0 : index
    %c0_56 = arith.constant 0 : index
    %79 = vector.load %arg14[%c0_54, %c0_55, %c0_56] : memref<1x1x64xf32, #tpu.memory_space<vmem>>, vector<1x1x64xf32>
    %80 = vector.shape_cast %79 : vector<1x1x64xf32> to vector<1x64xf32>
    %81 = vector.broadcast %80 : vector<1x64xf32> to vector<48x64xf32>
    %82 = arith.addf %78, %81 : vector<48x64xf32>
    %83 = arith.addf %64, %82 : vector<48x64xf32>
    %cst_57 = arith.constant dense<0.000000e+00> : vector<48xf32>
    %84 = vector.multi_reduction <add>, %83, %cst_57 [1] : vector<48x64xf32> to vector<48xf32>
    %85 = vector.shape_cast %84 : vector<48xf32> to vector<48x1xf32>
    %cst_58 = arith.constant 6.400000e+01 : f32
    %86 = vector.broadcast %cst_58 : f32 to vector<48x1xf32>
    %87 = arith.divf %85, %86 : vector<48x1xf32>
    %88 = vector.broadcast %87 : vector<48x1xf32> to vector<48x64xf32>
    %89 = arith.subf %83, %88 : vector<48x64xf32>
    %90 = arith.mulf %89, %89 : vector<48x64xf32>
    %cst_59 = arith.constant dense<0.000000e+00> : vector<48xf32>
    %91 = vector.multi_reduction <add>, %90, %cst_59 [1] : vector<48x64xf32> to vector<48xf32>
    %92 = vector.shape_cast %91 : vector<48xf32> to vector<48x1xf32>
    %cst_60 = arith.constant 6.400000e+01 : f32
    %93 = vector.broadcast %cst_60 : f32 to vector<48x1xf32>
    %94 = arith.divf %92, %93 : vector<48x1xf32>
    %cst_61 = arith.constant 9.99999974E-6 : f32
    %95 = vector.broadcast %cst_61 : f32 to vector<48x1xf32>
    %96 = arith.addf %94, %95 : vector<48x1xf32>
    %97 = math.rsqrt %96 : vector<48x1xf32>
    %98 = vector.broadcast %97 : vector<48x1xf32> to vector<48x64xf32>
    %99 = arith.mulf %89, %98 : vector<48x64xf32>
    %c0_62 = arith.constant 0 : index
    %c0_63 = arith.constant 0 : index
    %c0_64 = arith.constant 0 : index
    %100 = vector.load %arg15[%c0_62, %c0_63, %c0_64] : memref<1x1x64xf32, #tpu.memory_space<vmem>>, vector<1x1x64xf32>
    %101 = vector.shape_cast %100 : vector<1x1x64xf32> to vector<1x64xf32>
    %102 = vector.broadcast %101 : vector<1x64xf32> to vector<48x64xf32>
    %103 = arith.mulf %99, %102 : vector<48x64xf32>
    %c0_65 = arith.constant 0 : index
    %c0_66 = arith.constant 0 : index
    %c0_67 = arith.constant 0 : index
    %104 = vector.load %arg16[%c0_65, %c0_66, %c0_67] : memref<1x1x64xf32, #tpu.memory_space<vmem>>, vector<1x1x64xf32>
    %105 = vector.shape_cast %104 : vector<1x1x64xf32> to vector<1x64xf32>
    %106 = vector.broadcast %105 : vector<1x64xf32> to vector<48x64xf32>
    %107 = arith.addf %103, %106 : vector<48x64xf32>
    %108 = vector.shape_cast %107 : vector<48x64xf32> to vector<2x24x64xf32>
    %c0_68 = arith.constant 0 : index
    %c0_69 = arith.constant 0 : index
    %c0_70 = arith.constant 0 : index
    %109 = vector.load %arg17[%c0_68, %c0_69, %c0_70] : memref<2x24x64xf32, #tpu.memory_space<vmem>>, vector<2x24x64xf32>
    tpu.vector_store %arg17[%c0_68, %c0_69, %c0_70], %108 {strides = array<i32>} : memref<2x24x64xf32, #tpu.memory_space<vmem>>, vector<2x24x64xf32>,
    return
  }
  func.func @transform_0(%arg0: i32, %arg1: i32) -> (i32, i32, i32) {
    %c0_i32 = arith.constant 0 : i32
    %c0_i32_0 = arith.constant 0 : i32
    %c0_i32_1 = arith.constant 0 : i32
    return %c0_i32, %arg0, %c0_i32_0 : i32, i32, i32
  }
  func.func @transform_1(%arg0: i32, %arg1: i32) -> (i32, i32) {
    %c0_i32 = arith.constant 0 : i32
    %c0_i32_0 = arith.constant 0 : i32
    %c0_i32_1 = arith.constant 0 : i32
    return %c0_i32, %c0_i32_0 : i32, i32
  }
  func.func @transform_2(%arg0: i32, %arg1: i32) -> (i32, i32) {
    %c0_i32 = arith.constant 0 : i32
    %c0_i32_0 = arith.constant 0 : i32
    %c0_i32_1 = arith.constant 0 : i32
    return %c0_i32, %c0_i32_0 : i32, i32
  }
  func.func @transform_3(%arg0: i32, %arg1: i32) -> (i32, i32, i32) {
    %c0_i32 = arith.constant 0 : i32
    %c0_i32_0 = arith.constant 0 : i32
    %c0_i32_1 = arith.constant 0 : i32
    return %arg1, %c0_i32, %c0_i32_0 : i32, i32, i32
  }
  func.func @transform_4(%arg0: i32, %arg1: i32) -> (i32, i32, i32) {
    %c0_i32 = arith.constant 0 : i32
    %c0_i32_0 = arith.constant 0 : i32
    %c0_i32_1 = arith.constant 0 : i32
    return %arg1, %c0_i32, %c0_i32_0 : i32, i32, i32
  }
  func.func @transform_5(%arg0: i32, %arg1: i32) -> (i32, i32, i32) {
    %c0_i32 = arith.constant 0 : i32
    %c0_i32_0 = arith.constant 0 : i32
    %c0_i32_1 = arith.constant 0 : i32
    return %arg1, %c0_i32, %c0_i32_0 : i32, i32, i32
  }
  func.func @transform_6(%arg0: i32, %arg1: i32) -> (i32, i32, i32) {
    %c0_i32 = arith.constant 0 : i32
    %c0_i32_0 = arith.constant 0 : i32
    %c0_i32_1 = arith.constant 0 : i32
    return %arg1, %c0_i32, %c0_i32_0 : i32, i32, i32
  }
  func.func @transform_7(%arg0: i32, %arg1: i32) -> (i32, i32, i32) {
    %c0_i32 = arith.constant 0 : i32
    %c0_i32_0 = arith.constant 0 : i32
    %c0_i32_1 = arith.constant 0 : i32
    return %arg1, %c0_i32, %c0_i32_0 : i32, i32, i32
  }
  func.func @transform_8(%arg0: i32, %arg1: i32) -> (i32, i32, i32) {
    %c0_i32 = arith.constant 0 : i32
    %c0_i32_0 = arith.constant 0 : i32
    %c0_i32_1 = arith.constant 0 : i32
    return %arg1, %c0_i32, %c0_i32_0 : i32, i32, i32
  }
  func.func @transform_9(%arg0: i32, %arg1: i32) -> (i32, i32, i32) {
    %c0_i32 = arith.constant 0 : i32
    %c0_i32_0 = arith.constant 0 : i32
    %c0_i32_1 = arith.constant 0 : i32
    return %arg1, %c0_i32, %c0_i32_0 : i32, i32, i32
  }
  func.func @transform_10(%arg0: i32, %arg1: i32) -> (i32, i32, i32) {
    %c0_i32 = arith.constant 0 : i32
    %c0_i32_0 = arith.constant 0 : i32
    %c0_i32_1 = arith.constant 0 : i32
    return %arg1, %c0_i32, %c0_i32_0 : i32, i32, i32
  }
  func.func @transform_11(%arg0: i32, %arg1: i32) -> (i32, i32, i32) {
    %c0_i32 = arith.constant 0 : i32
    %c0_i32_0 = arith.constant 0 : i32
    %c0_i32_1 = arith.constant 0 : i32
    return %arg1, %c0_i32, %c0_i32_0 : i32, i32, i32
  }
  func.func @transform_12(%arg0: i32, %arg1: i32) -> (i32, i32, i32) {
    %c0_i32 = arith.constant 0 : i32
    %c0_i32_0 = arith.constant 0 : i32
    %c0_i32_1 = arith.constant 0 : i32
    return %arg1, %c0_i32, %c0_i32_0 : i32, i32, i32
  }
  func.func @transform_13(%arg0: i32, %arg1: i32) -> (i32, i32, i32) {
    %c0_i32 = arith.constant 0 : i32
    %c0_i32_0 = arith.constant 0 : i32
    %c0_i32_1 = arith.constant 0 : i32
    return %arg1, %c0_i32, %c0_i32_0 : i32, i32, i32
  }
  func.func @transform_14(%arg0: i32, %arg1: i32) -> (i32, i32, i32) {
    %c0_i32 = arith.constant 0 : i32
    %c0_i32_0 = arith.constant 0 : i32
    %c0_i32_1 = arith.constant 0 : i32
    return %arg1, %c0_i32, %c0_i32_0 : i32, i32, i32
  }
  func.func @transform_15(%arg0: i32, %arg1: i32) -> (i32, i32, i32) {
    %c0_i32 = arith.constant 0 : i32
    %c0_i32_0 = arith.constant 0 : i32
    %c0_i32_1 = arith.constant 0 : i32
    return %c0_i32, %arg0, %c0_i32_0 : i32, i32, i32
  }
}

module attributes {stable_mosaic.version = 11 : i64} {
  func.func @_ln_linear_kernel(%arg0: i32, %arg1: memref<2x64xf32, #tpu.memory_space<vmem>>, %arg2: memref<1x64xf32, #tpu.memory_space<vmem>>, %arg3: memref<1x64xf32, #tpu.memory_space<vmem>>, %arg4: memref<64x10xbf16, #tpu.memory_space<vmem>>, %arg5: memref<1x10xf32, #tpu.memory_space<vmem>>, %arg6: memref<2x10xf32, #tpu.memory_space<vmem>>) attributes {dimension_semantics = [#tpu.dimension_semantics<arbitrary>], iteration_bounds = array<i64: 1>, scalar_prefetch = 0 : i64, scratch_operands = 0 : i64, tpu.core_type = #tpu.core_type<tc>, window_params = [{pipeline_mode = #tpu.pipeline_mode<synchronous>, transform_indices = @transform_0, window_bounds = array<i64: 2, 64>}, {pipeline_mode = #tpu.pipeline_mode<synchronous>, transform_indices = @transform_1, window_bounds = array<i64: 1, 64>}, {pipeline_mode = #tpu.pipeline_mode<synchronous>, transform_indices = @transform_2, window_bounds = array<i64: 1, 64>}, {pipeline_mode = #tpu.pipeline_mode<synchronous>, transform_indices = @transform_3, window_bounds = array<i64: 64, 10>}, {pipeline_mode = #tpu.pipeline_mode<synchronous>, transform_indices = @transform_4, window_bounds = array<i64: 1, 10>}, {pipeline_mode = #tpu.pipeline_mode<synchronous>, transform_indices = @transform_5, window_bounds = array<i64: 2, 10>}]} {
    %c0 = arith.constant 0 : index
    %c0_0 = arith.constant 0 : index
    %0 = vector.load %arg1[%c0, %c0_0] : memref<2x64xf32, #tpu.memory_space<vmem>>, vector<2x64xf32>
    %cst = arith.constant dense<0.000000e+00> : vector<2xf32>
    %1 = vector.multi_reduction <add>, %0, %cst [1] : vector<2x64xf32> to vector<2xf32>
    %2 = vector.shape_cast %1 : vector<2xf32> to vector<2x1xf32>
    %cst_1 = arith.constant 6.400000e+01 : f32
    %3 = vector.broadcast %cst_1 : f32 to vector<2x1xf32>
    %4 = arith.divf %2, %3 : vector<2x1xf32>
    %5 = vector.broadcast %4 : vector<2x1xf32> to vector<2x64xf32>
    %6 = arith.subf %0, %5 : vector<2x64xf32>
    %7 = arith.mulf %6, %6 : vector<2x64xf32>
    %cst_2 = arith.constant dense<0.000000e+00> : vector<2xf32>
    %8 = vector.multi_reduction <add>, %7, %cst_2 [1] : vector<2x64xf32> to vector<2xf32>
    %9 = vector.shape_cast %8 : vector<2xf32> to vector<2x1xf32>
    %cst_3 = arith.constant 6.400000e+01 : f32
    %10 = vector.broadcast %cst_3 : f32 to vector<2x1xf32>
    %11 = arith.divf %9, %10 : vector<2x1xf32>
    %cst_4 = arith.constant 9.99999974E-6 : f32
    %12 = vector.broadcast %cst_4 : f32 to vector<2x1xf32>
    %13 = arith.addf %11, %12 : vector<2x1xf32>
    %14 = math.rsqrt %13 : vector<2x1xf32>
    %15 = vector.broadcast %14 : vector<2x1xf32> to vector<2x64xf32>
    %16 = arith.mulf %6, %15 : vector<2x64xf32>
    %c0_5 = arith.constant 0 : index
    %c0_6 = arith.constant 0 : index
    %17 = vector.load %arg2[%c0_5, %c0_6] : memref<1x64xf32, #tpu.memory_space<vmem>>, vector<1x64xf32>
    %18 = vector.broadcast %17 : vector<1x64xf32> to vector<2x64xf32>
    %19 = arith.mulf %16, %18 : vector<2x64xf32>
    %c0_7 = arith.constant 0 : index
    %c0_8 = arith.constant 0 : index
    %20 = vector.load %arg3[%c0_7, %c0_8] : memref<1x64xf32, #tpu.memory_space<vmem>>, vector<1x64xf32>
    %21 = vector.broadcast %20 : vector<1x64xf32> to vector<2x64xf32>
    %22 = arith.addf %19, %21 : vector<2x64xf32>
    %23 = arith.truncf %22 : vector<2x64xf32> to vector<2x64xbf16>
    %c0_9 = arith.constant 0 : index
    %c0_10 = arith.constant 0 : index
    %24 = vector.load %arg4[%c0_9, %c0_10] : memref<64x10xbf16, #tpu.memory_space<vmem>>, vector<64x10xbf16>
    %cst_11 = arith.constant dense<0.000000e+00> : vector<2x10xf32>
    %25 = tpu.matmul %23, %24, %cst_11 {dimension_numbers = #tpu.dot_dimension_numbers<[1], [0], [0], [1], [0, 0, 1, 1], [], []>} : vector<2x64xbf16>, vector<64x10xbf16>, vector<2x10xf32> -> vector<2x10xf32>
    %c0_12 = arith.constant 0 : index
    %c0_13 = arith.constant 0 : index
    %26 = vector.load %arg5[%c0_12, %c0_13] : memref<1x10xf32, #tpu.memory_space<vmem>>, vector<1x10xf32>
    %27 = vector.broadcast %26 : vector<1x10xf32> to vector<2x10xf32>
    %28 = arith.addf %25, %27 : vector<2x10xf32>
    %c0_14 = arith.constant 0 : index
    %c0_15 = arith.constant 0 : index
    %29 = vector.load %arg6[%c0_14, %c0_15] : memref<2x10xf32, #tpu.memory_space<vmem>>, vector<2x10xf32>
    tpu.vector_store %arg6[%c0_14, %c0_15], %28 {strides = array<i32>} : memref<2x10xf32, #tpu.memory_space<vmem>>, vector<2x10xf32>,
    return
  }
  func.func @transform_0(%arg0: i32) -> (i32, i32) {
    %c0_i32 = arith.constant 0 : i32
    %c0_i32_0 = arith.constant 0 : i32
    %c0_i32_1 = arith.constant 0 : i32
    return %c0_i32, %c0_i32_0 : i32, i32
  }
  func.func @transform_1(%arg0: i32) -> (i32, i32) {
    %c0_i32 = arith.constant 0 : i32
    %c0_i32_0 = arith.constant 0 : i32
    %c0_i32_1 = arith.constant 0 : i32
    return %c0_i32, %c0_i32_0 : i32, i32
  }
  func.func @transform_2(%arg0: i32) -> (i32, i32) {
    %c0_i32 = arith.constant 0 : i32
    %c0_i32_0 = arith.constant 0 : i32
    %c0_i32_1 = arith.constant 0 : i32
    return %c0_i32, %c0_i32_0 : i32, i32
  }
  func.func @transform_3(%arg0: i32) -> (i32, i32) {
    %c0_i32 = arith.constant 0 : i32
    %c0_i32_0 = arith.constant 0 : i32
    %c0_i32_1 = arith.constant 0 : i32
    return %c0_i32, %c0_i32_0 : i32, i32
  }
  func.func @transform_4(%arg0: i32) -> (i32, i32) {
    %c0_i32 = arith.constant 0 : i32
    %c0_i32_0 = arith.constant 0 : i32
    %c0_i32_1 = arith.constant 0 : i32
    return %c0_i32, %c0_i32_0 : i32, i32
  }
  func.func @transform_5(%arg0: i32) -> (i32, i32) {
    %c0_i32 = arith.constant 0 : i32
    %c0_i32_0 = arith.constant 0 : i32
    %c0_i32_1 = arith.constant 0 : i32
    return %c0_i32, %c0_i32_0 : i32, i32
  }
}

</mosaic_0001>

<llo_original>
// kernel: vit_forward.3
$region0: #{vit_forward.3}
  #allocation0 [shape = 'u32[]', space=smem, size = 0x4, offset = 0x4, fixed_abs, tag = 'smem constant byte address 0x4 - core index']
  #allocation1 [shape = 'u32[72,128]{1,0:T(1,128)}', space=vmem, size = 0x9000, scoped, tag = 'internal scratch']
  %s0 = inlined_call_operand.vmem [shape: f32[32,192], index: 0, kind: input, shape index: {}]
  %s1 = inlined_call_operand.vmem [shape: bf16[192,64], index: 1, kind: input, shape index: {}]
  %s2 = inlined_call_operand.vmem [shape: f32[1,64], index: 2, kind: input, shape index: {}]
  %s3 = inlined_call_operand.vmem [shape: f32[32,64], index: 3, kind: output, shape index: {}]
  %s4 = sld [smem:[#allocation0]]
  $region22: #{vit_forward.3} parent=0
    _
  %s6 = ssub.s32 1, %s4
  %s7 = scalar_select 0, %s6, %s4
  // Predicated region
  $region2: #{vit_forward.3} parent=0 // pred_check
    _
  $region3: #{vit_forward.3} parent=0 // pred_check_branch
    %9 = sbr.rel (0) target = $region5
  $region4: #{vit_forward.3} parent=0 // pred_region
    _
  $region5: #{vit_forward.3} parent=0 // pred_fallthru
    _
  // Predicated region
  $region6: #{vit_forward.3} parent=0 // pred_check
    _
  $region7: #{vit_forward.3} parent=0 // pred_check_branch
    %11 = sbr.rel (0) target = $region9
  $region8: #{vit_forward.3} parent=0 // pred_region
    _
  $region9: #{vit_forward.3} parent=0 // pred_fallthru
    _
  // Predicated region
  $region10: #{vit_forward.3} parent=0 // pred_check
    _
  $region11: #{vit_forward.3} parent=0 // pred_check_branch
    %13 = sbr.rel (0) target = $region13
  $region12: #{vit_forward.3} parent=0 // pred_region
    _
  $region13: #{vit_forward.3} parent=0 // pred_fallthru
    _
  %v15 = vld [vmem:[%s0] sm:$0xff]
  %v16 = vld [vmem:[%s0 + $0x8] sm:$0xff]
  %v17 = vld [vmem:[%s0 + $0x10] sm:$0xff]
  %v18 = vld [vmem:[%s0 + $0x18] sm:$0xff]
  %v19 = vld [vmem:[%s0 + $0x20] sm:$0xff]
  %v20 = vld [vmem:[%s0 + $0x28] sm:$0xff]
  %v21 = vld [vmem:[%s0 + $0x30] sm:$0xff]
  %v22 = vld [vmem:[%s0 + $0x38] sm:$0xff]
  %v23 = vpack.c.bf16 %v17, %v15
  %v24 = vpack.c.bf16 %v18, %v16
  %v25 = vpack.c.bf16 %v21, %v19
  %v26 = vpack.c.bf16 %v22, %v20
  %v27 = vld [vmem:[%s1] sm:$0xf]
  %v28 = vld [vmem:[%s1 + $0x4] sm:$0xf]
  %v29 = vld [vmem:[%s1 + $0x8] sm:$0xf]
  %v30 = vld [vmem:[%s1 + $0xc] sm:$0xf]
  %v31 = vld [vmem:[%s1 + $0x10] sm:$0xf]
  %v32 = vld [vmem:[%s1 + $0x14] sm:$0xf]
  %v33 = vld [vmem:[%s1 + $0x18] sm:$0xf]
  %v34 = vld [vmem:[%s1 + $0x1c] sm:$0xf]
  %v35 = vld [vmem:[%s1 + $0x20] sm:$0xf]
  %v36 = vld [vmem:[%s1 + $0x24] sm:$0xf]
  %v37 = vld [vmem:[%s1 + $0x28] sm:$0xf]
  %v38 = vld [vmem:[%s1 + $0x2c] sm:$0xf]
  %v39 = vld [vmem:[%s1 + $0x30] sm:$0xf]
  %v40 = vld [vmem:[%s1 + $0x34] sm:$0xf]
  %v41 = vld [vmem:[%s1 + $0x38] sm:$0xf]
  %v42 = vld [vmem:[%s1 + $0x3c] sm:$0xf]
  %v43 = vld [vmem:[%s1 + $0x40] sm:$0xf]
  %v44 = vld [vmem:[%s1 + $0x44] sm:$0xf]
  %v45 = vld [vmem:[%s1 + $0x48] sm:$0xf]
  %v46 = vld [vmem:[%s1 + $0x4c] sm:$0xf]
  %v47 = vld [vmem:[%s1 + $0x50] sm:$0xf]
  %v48 = vld [vmem:[%s1 + $0x54] sm:$0xf]
  %v49 = vld [vmem:[%s1 + $0x58] sm:$0xf]
  %v50 = vld [vmem:[%s1 + $0x5c] sm:$0xf]
  %v51 = vld [vmem:[%s2] sm:$0x1]
  %v53 = vperm.slane %v51, 0
  %v79 = vunpack.c.l.b16 %v27
  %v80 = vunpack.c.l.b16 %v28
  %v81 = vunpack.c.l.b16 %v29
  %v82 = vunpack.c.l.b16 %v30
  %v83 = vunpack.c.l.b16 %v31
  %v84 = vunpack.c.l.b16 %v32
  %v85 = vunpack.c.l.b16 %v33
  %v86 = vunpack.c.l.b16 %v34
  %v87 = vunpack.c.l.b16 %v35
  %v88 = vunpack.c.l.b16 %v36
  %v89 = vunpack.c.l.b16 %v37
  %v90 = vunpack.c.l.b16 %v38
  %v91 = vunpack.c.l.b16 %v39
  %v92 = vunpack.c.l.b16 %v40
  %v93 = vunpack.c.l.b16 %v41
  %v94 = vunpack.c.l.b16 %v42
  %v95 = vunpack.c.l.b16 %v43
  %v96 = vunpack.c.l.b16 %v44
  %v97 = vunpack.c.l.b16 %v45
  %v98 = vunpack.c.l.b16 %v46
  %v99 = vunpack.c.l.b16 %v47
  %v100 = vunpack.c.l.b16 %v48
  %v101 = vunpack.c.l.b16 %v49
  %v102 = vunpack.c.l.b16 %v50
  %v103 = vpack.c.b16 %v80, %v79
  %v104 = vpack.c.b16 %v82, %v81
  %v105 = vpack.c.b16 %v84, %v83
  %v106 = vpack.c.b16 %v86, %v85
  %v107 = vpack.c.b16 %v88, %v87
  %v108 = vpack.c.b16 %v90, %v89
  %v109 = vpack.c.b16 %v92, %v91
  %v110 = vpack.c.b16 %v94, %v93
  %v111 = vpack.c.b16 %v96, %v95
  %v112 = vpack.c.b16 %v98, %v97
  %v113 = vpack.c.b16 %v100, %v99
  %v114 = vpack.c.b16 %v102, %v101
  %vm127 = vcmask 523264
  %v129 = vsel %vm127, %v24, 0
  %v132 = vsel %vm127, %v26, 0
  %134 = vmatpush.bf16.msra.mxu0 %v110
  %135 = vmatpush.bf16.msra.mxu0 %v109
  %136 = vmatpush.bf16.msra.mxu0 %v108
  %137 = vmatpush.bf16.msra.mxu0 %v107
  %138 = vmatpush.bf16.msra.mxu0 %v106
  %139 = vmatpush.bf16.msra.mxu0 %v105
  %140 = vmatpush.bf16.msra.mxu0 %v104
  %141 = vmatpush.bf16.msra.mxu0 %v103
  %142 = vmatmul.bf16.gmra.mxu0 %v23
  %v143 = vpop.f32.mrf.mxu0
  %v144 = vadd.f32 %v53, %v143
  %v145 = vpop.f32.mrf.mxu0
  %v146 = vadd.f32 %v53, %v145
  %147 = vmatmul.bf16.gmra.mxu0 %v25
  %v148 = vpop.f32.mrf.mxu0
  %v149 = vadd.f32 %v53, %v148
  %v150 = vpop.f32.mrf.mxu0
  %v151 = vadd.f32 %v53, %v150
  %152 = vdwg.mxu0
  %153 = vmatpush.bf16.msra.mxu0 0
  %154 = vmatpush.bf16.msra.mxu0 0
  %155 = vmatpush.bf16.msra.mxu0 0
  %156 = vmatpush.bf16.msra.mxu0 0
  %157 = vmatpush.bf16.msra.mxu0 %v114
  %158 = vmatpush.bf16.msra.mxu0 %v113
  %159 = vmatpush.bf16.msra.mxu0 %v112
  %160 = vmatpush.bf16.msra.mxu0 %v111
  %161 = vmatmul.bf16.gmra.mxu0 %v129
  %v162 = vpop.f32.mrf.mxu0
  %v163 = vadd.f32 %v144, %v162
  %v164 = vpop.f32.mrf.mxu0
  %v165 = vadd.f32 %v146, %v164
  %166 = vmatmul.bf16.gmra.mxu0 %v132
  %v167 = vpop.f32.mrf.mxu0
  %v168 = vadd.f32 %v149, %v167
  %v169 = vpop.f32.mrf.mxu0
  %v170 = vadd.f32 %v151, %v169
  %171 = vdwg.mxu0
  %172 = vst.msk [vmem:[%s3] sm:$0xff] %vm127, %v163
  %173 = vst.msk [vmem:[%s3 + $0x8] sm:$0xff] %vm127, %v165
  %174 = vst.msk [vmem:[%s3 + $0x10] sm:$0xff] %vm127, %v168
  %175 = vst.msk [vmem:[%s3 + $0x18] sm:$0xff] %vm127, %v170
  // Predicated region
  $region14: #{vit_forward.3} parent=0 // pred_check
    _
  $region15: #{vit_forward.3} parent=0 // pred_check_branch
    %177 = sbr.rel (0) target = $region17
  $region16: #{vit_forward.3} parent=0 // pred_region
    _
  $region17: #{vit_forward.3} parent=0 // pred_fallthru
    _
  // Predicated region
  $region18: #{vit_forward.3} parent=0 // pred_check
    _
  $region19: #{vit_forward.3} parent=0 // pred_check_branch
    %179 = sbr.rel (0) target = $region21
  $region20: #{vit_forward.3} parent=0 // pred_region
    _
  $region21: #{vit_forward.3} parent=0 // pred_fallthru
    _

// kernel: vit_forward.5
$region0: #{vit_forward.5}
  #allocation0 [shape = 'u32[]', space=smem, size = 0x4, offset = 0x4, fixed_abs, tag = 'smem constant byte address 0x4 - core index']
  #allocation1 [shape = 'u32[72,128]{1,0:T(1,128)}', space=vmem, size = 0x9000, scoped, tag = 'internal scratch']
  %s0 = inlined_call_operand.vmem [shape: f32[2,64], index: 0, kind: input, shape index: {}]
  %s1 = inlined_call_operand.vmem [shape: f32[1,64], index: 1, kind: input, shape index: {}]
  %s2 = inlined_call_operand.vmem [shape: f32[1,64], index: 2, kind: input, shape index: {}]
  %s3 = inlined_call_operand.vmem [shape: bf16[64,10], index: 3, kind: input, shape index: {}]
  %s4 = inlined_call_operand.vmem [shape: f32[1,10], index: 4, kind: input, shape index: {}]
  %s5 = inlined_call_operand.hbm [shape: f32[2,10], index: 5, kind: output, shape index: {}]
  %s6 = sld [smem:[#allocation0]]
  $region30: #{vit_forward.5} parent=0
    _
  %s8 = ssub.s32 1, %s6
  %s9 = scalar_select 0, %s8, %s6
  $region1: #{vit_forward.5} parent=0
    #allocation2 [shape = 'u8[1024]{0}', space=vmem, size = 0x400, scoped, tag = 'output window, operand 0, single buffered']
    #allocation3 [shape = 's32[1]{0}', space=sflag, size = 0x4, scoped, tag = 'scoped memory for vit_forward.5']
    %10 = vsyncpa [#allocation3], 0
    // Predicated region
    $region2: #{vit_forward.5} parent=1 // pred_check
      _
    $region3: #{vit_forward.5} parent=1 // pred_check_branch
      %12 = sbr.rel (0) target = $region5
    $region4: #{vit_forward.5} parent=1 // pred_region
      _
    $region5: #{vit_forward.5} parent=1 // pred_fallthru
      _
    // Predicated region
    $region6: #{vit_forward.5} parent=1 // pred_check
      _
    $region7: #{vit_forward.5} parent=1 // pred_check_branch
      %14 = sbr.rel (0) target = $region9
    $region8: #{vit_forward.5} parent=1 // pred_region
      _
    $region9: #{vit_forward.5} parent=1 // pred_fallthru
      _
    // Predicated region
    $region10: #{vit_forward.5} parent=1 // pred_check
      _
    $region11: #{vit_forward.5} parent=1 // pred_check_branch
      %16 = sbr.rel (0) target = $region13
    $region12: #{vit_forward.5} parent=1 // pred_region
      _
    $region13: #{vit_forward.5} parent=1 // pred_fallthru
      _
    // Predicated region
    $region14: #{vit_forward.5} parent=1 // pred_check
      _
    $region15: #{vit_forward.5} parent=1 // pred_check_branch
      %18 = sbr.rel (0) target = $region17
    $region16: #{vit_forward.5} parent=1 // pred_region
      _
    $region17: #{vit_forward.5} parent=1 // pred_fallthru
      _
    // Predicated region
    $region18: #{vit_forward.5} parent=1 // pred_check
      _
    $region19: #{vit_forward.5} parent=1 // pred_check_branch
      %20 = sbr.rel (0) target = $region21
    $region20: #{vit_forward.5} parent=1 // pred_region
      _
    $region21: #{vit_forward.5} parent=1 // pred_fallthru
      _
    %v22 = vld [vmem:[%s0] sm:$0x3]
    %vm23 = vcmask 517120
    %v24 = vsel %vm23, %v22, 0.0
    %25 = vadd.xlane.f32.xlu0 %v24
    %v26 = vpop.xlane.xlu0 %25
    %v27 = vrcp.pop 64.0
    %v28 = vmul.f32 64.0, %v27
    %v29 = vsub.f32 1.0, %v28
    %v30 = vmul.f32 %v27, %v29
    %v31 = vadd.f32 %v27, %v30
    %vm32 = vweird.f32 %v27
    %v33 = vsel %vm32, %v27, %v31
    %v34 = vmul.f32 %v26, %v33
    %v35 = vsub.f32 %v22, %v34
    %v36 = vmul.f32 %v35, %v35
    %v37 = vsel %vm23, %v36, 0.0
    %38 = vadd.xlane.f32.xlu0 %v37
    %v39 = vpop.xlane.xlu0 %38
    %v40 = vmul.f32 %v39, %v33
    %v41 = vadd.f32 %v40, 1e-05
    %v42 = vrsqrt.pop %v41
    %v43 = vmul.f32 %v42, %v41
    %v44 = vmul.f32 %v43, %v42
    %v45 = vmul.f32 0.5, %v44
    %v46 = vsub.f32 1.5, %v45
    %v47 = vmul.f32 %v42, %v46
    %vm48 = vweird.f32 %v41
    %vm49 = vweird.f32 %v42
    %vm50 = vmor %vm48, %vm49
    %v51 = vsel %vm50, %v42, %v47
    %v52 = vmul.f32 %v35, %v51
    %v53 = vld [vmem:[%s1] sm:$0x1]
    %v55 = vperm.slane %v53, 0
    %v57 = vmul.f32 %v52, %v55
    %v58 = vld [vmem:[%s2] sm:$0x1]
    %v60 = vperm.slane %v58, 0
    %v62 = vadd.f32 %v57, %v60
    %v63 = vpack.c.bf16 %v62, %v62
    %v64 = vld [vmem:[%s3] sm:$0xf]
    %v65 = vld [vmem:[%s3 + $0x4] sm:$0xf]
    %v66 = vld [vmem:[%s3 + $0x8] sm:$0xf]
    %v67 = vld [vmem:[%s3 + $0xc] sm:$0xf]
    %v68 = vld [vmem:[%s3 + $0x10] sm:$0xf]
    %v69 = vld [vmem:[%s3 + $0x14] sm:$0xf]
    %v70 = vld [vmem:[%s3 + $0x18] sm:$0xf]
    %v71 = vld [vmem:[%s3 + $0x1c] sm:$0xf]
    %v72 = vld [vmem:[%s4] sm:$0x1]
    %v74 = vperm.slane %v72, 0
    %v84 = vunpack.c.l.b16 %v64
    %v85 = vunpack.c.l.b16 %v65
    %v86 = vunpack.c.l.b16 %v66
    %v87 = vunpack.c.l.b16 %v67
    %v88 = vunpack.c.l.b16 %v68
    %v89 = vunpack.c.l.b16 %v69
    %v90 = vunpack.c.l.b16 %v70
    %v91 = vunpack.c.l.b16 %v71
    %v92 = vpack.c.b16 %v85, %v84
    %v93 = vpack.c.b16 %v87, %v86
    %v94 = vpack.c.b16 %v89, %v88
    %v95 = vpack.c.b16 %v91, %v90
    %vm100 = vcmask 523264
    %v102 = vsel %vm100, %v63, 0
    %104 = vmatpush.bf16.msra.mxu0 0
    %105 = vmatpush.bf16.msra.mxu0 0
    %106 = vmatpush.bf16.msra.mxu0 0
    %107 = vmatpush.bf16.msra.mxu0 0
    %108 = vmatpush.bf16.msra.mxu0 %v95
    %109 = vmatpush.bf16.msra.mxu0 %v94
    %110 = vmatpush.bf16.msra.mxu0 %v93
    %111 = vmatpush.bf16.msra.mxu0 %v92
    %112 = vmatmul.bf16.gmra.mxu0 %v102
    %v113 = vpop.f32.mrf.mxu0
    %v114 = vadd.f32 %v74, %v113
    %v115 = vpop.f32.mrf.mxu0
    %116 = vdwg.mxu0
    %vm117 = vcmask 74752
    %118 = vst.msk [vmem:[#allocation2] sm:$0x3] %vm117, %v114
    // Predicated region
    $region22: #{vit_forward.5} parent=1 // pred_check
      _
    $region23: #{vit_forward.5} parent=1 // pred_check_branch
      %120 = sbr.rel (0) target = $region25
    $region24: #{vit_forward.5} parent=1 // pred_region
      %122 = vsyncadd [#allocation3], 0
      %s124 = sshll.u32 [#allocation2], 4
      %s125 = int_to_ptr.vmem [resolvable:$true] %s124
      %s126 = sshll.u32 %s5, 4
      %s127 = int_to_ptr.hbm [resolvable:$true] %s126
      %129 = dma.vmem_to_hbm [thread:$0]  %s125, 32, %s127, [#allocation3]
    $region25: #{vit_forward.5} parent=1 // pred_fallthru
      _
    // Predicated region
    $region26: #{vit_forward.5} parent=1 // pred_check
      _
    $region27: #{vit_forward.5} parent=1 // pred_check_branch
      %131 = sbr.rel (0) target = $region29
    $region28: #{vit_forward.5} parent=1 // pred_region
      %133 = dma.done [#allocation3], 32
    $region29: #{vit_forward.5} parent=1 // pred_fallthru
      _
    %134 = vsyncpa [#allocation3], 1

// kernel: vit_forward.4
$region0: #{vit_forward.4}
  #allocation0 [shape = 'u32[]', space=smem, size = 0x4, offset = 0x4, fixed_abs, tag = 'smem constant byte address 0x4 - core index']
  #allocation1 [shape = 'u32[72,128]{1,0:T(1,128)}', space=vmem, size = 0x9000, scoped, tag = 'internal scratch']
  #allocation2 [shape = 'f32[48,64]{1,0:T(8,128)}', space=vmem, size = 0x6000, scoped, tag = 'scratch operand']
  #allocation3 [shape = 'f32[48,64]{1,0:T(8,128)}', space=vmem, size = 0x6000, scoped, tag = 'scratch operand']
  %s0 = inlined_call_operand.vmem [shape: f32[2,24,64], index: 0, kind: input, shape index: {}]
  %s1 = inlined_call_operand.vmem [shape: bf16[64,4], index: 1, kind: input, shape index: {}]
  %s2 = inlined_call_operand.vmem [shape: bf16[4,64], index: 2, kind: input, shape index: {}]
  %s3 = inlined_call_operand.vmem [shape: bf16[2,64,192], index: 3, kind: input, shape index: {}]
  %s4 = inlined_call_operand.vmem [shape: f32[2,1,192], index: 4, kind: input, shape index: {}]
  %s5 = inlined_call_operand.vmem [shape: bf16[2,64,64], index: 5, kind: input, shape index: {}]
  %s6 = inlined_call_operand.vmem [shape: f32[2,1,64], index: 6, kind: input, shape index: {}]
  %s7 = inlined_call_operand.vmem [shape: f32[2,1,64], index: 7, kind: input, shape index: {}]
  %s8 = inlined_call_operand.vmem [shape: f32[2,1,64], index: 8, kind: input, shape index: {}]
  %s9 = inlined_call_operand.vmem [shape: bf16[2,64,256], index: 9, kind: input, shape index: {}]
  %s10 = inlined_call_operand.vmem [shape: f32[2,1,256], index: 10, kind: input, shape index: {}]
  %s11 = inlined_call_operand.vmem [shape: bf16[2,256,64], index: 11, kind: input, shape index: {}]
  %s12 = inlined_call_operand.vmem [shape: f32[2,1,64], index: 12, kind: input, shape index: {}]
  %s13 = inlined_call_operand.vmem [shape: f32[2,1,64], index: 13, kind: input, shape index: {}]
  %s14 = inlined_call_operand.vmem [shape: f32[2,1,64], index: 14, kind: input, shape index: {}]
  %s15 = inlined_call_operand.vmem [shape: f32[2,24,64], index: 15, kind: output, shape index: {}]
  %s16 = sld [smem:[#allocation0]]
  $region104: #{vit_forward.4} parent=0
    _
  %s18 = ssub.s32 1, %s16
  %s19 = scalar_select 0, %s18, %s16
  loop: start=0, step=1, limit=4
  $region2: #{vit_forward.4} parent=0 // loop_pre_header
    _
  $region3: #{vit_forward.4} parent=0 // loop_header
    %s21 = sphi 0, %s25
    %p22 = scmp.ge.s32.totalorder %s21, 4
    %s28 = sphi 0, %s40
    %s29 = sphi 0, %s36
    %s30 = sphi 0, %s28
    %s31 = sphi 0, %s29
    %s32 = sphi 0, %s30
    %s33 = sphi 0, %s31
    %s43 = sphi 0, %s45
    %s46 = sphi 0, %s43
    %s47 = sphi 0, %s46
    %s63 = sphi 0, %s47
    %s67 = sphi 0, %s67
    %s69 = sphi 0, %s67
    %s70 = sphi 0, %s69
    %s84 = sphi 0, %s70
    %s88 = sphi 0, %s88
    %s90 = sphi 0, %s88
    %s91 = sphi 0, %s90
    %s105 = sphi 0, %s91
    %s111 = sphi 0, %s113
    %s114 = sphi 0, %s111
    %s115 = sphi 0, %s114
    %s131 = sphi 0, %s115
    %s137 = sphi 0, %s139
    %s140 = sphi 0, %s137
    %s141 = sphi 0, %s140
    %s157 = sphi 0, %s141
    %s163 = sphi 0, %s165
    %s166 = sphi 0, %s163
    %s167 = sphi 0, %s166
    %s183 = sphi 0, %s167
    %s189 = sphi 0, %s191
    %s192 = sphi 0, %s189
    %s193 = sphi 0, %s192
    %s209 = sphi 0, %s193
    %s215 = sphi 0, %s217
    %s218 = sphi 0, %s215
    %s219 = sphi 0, %s218
    %s235 = sphi 0, %s219
    %s241 = sphi 0, %s243
    %s244 = sphi 0, %s241
    %s245 = sphi 0, %s244
    %s261 = sphi 0, %s245
    %s267 = sphi 0, %s269
    %s270 = sphi 0, %s267
    %s271 = sphi 0, %s270
    %s287 = sphi 0, %s271
    %s293 = sphi 0, %s295
    %s296 = sphi 0, %s293
    %s297 = sphi 0, %s296
    %s313 = sphi 0, %s297
    %s319 = sphi 0, %s321
    %s322 = sphi 0, %s319
    %s323 = sphi 0, %s322
    %s339 = sphi 0, %s323
    %s345 = sphi 0, %s347
    %s348 = sphi 0, %s345
    %s349 = sphi 0, %s348
    %s365 = sphi 0, %s349
    %s371 = sphi 0, %s373
    %s374 = sphi 0, %s371
    %s375 = sphi 0, %s374
    %s391 = sphi 0, %s375
    %s397 = sphi 0, %s399
    %s400 = sphi 0, %s397
    %s401 = sphi 0, %s400
    %s417 = sphi 0, %s401
    %s423 = sphi 0, %s425
    %s426 = sphi 0, %s423
    %s427 = sphi 0, %s426
    %s443 = sphi 0, %s427
  $region4: #{vit_forward.4} parent=0 // loop_header_branch
    %24 = sbr.rel (%p22) target = $region8
  $region5: #{vit_forward.4} parent=0 // loop_body
    %s26 = ssub.s32 %s21, 1
    %s27 = ssub.s32 %s21, 2
    %s34 = sadd.s32 1, %s29
    %p35 = scmp.ge.s32.totalorder %s34, 2
    %s36 = scalar_select %p35, 0, %s34
    %s37 = sadd.s32 1, %s28
    %s38 = scalar_select %p35, %s37, %s28
    %p39 = scmp.ge.s32.totalorder %s38, 1
    %s40 = scalar_select %p39, 0, %s38
    %s41 = ssub.s32 %s28, %s40
    %p42 = scmp.eq.s32.totalorder %s41, 0
    %s44 = sadd.s32 %s43, 1
    %s45 = scalar_select %p42, %s43, %s44
    %p48 = pneg %p42
    %p49 = scmp.eq.s32.totalorder %s21, 1
    %p50 = por %p48, %p49
    %p51 = scmp.ne.s32.totalorder %s43, %s46
    %p52 = scmp.eq.s32.totalorder %s21, 0
    %p53 = por %p51, %p52
    %p54 = scmp.ne.s32.totalorder %s43, %s46
    %p55 = scmp.eq.s32.totalorder %s26, 1
    %p56 = por %p54, %p55
    %p57 = scmp.ne.s32.totalorder %s46, %s47
    %p58 = scmp.eq.s32.totalorder %s26, 0
    %p59 = por %p57, %p58
    %p60 = scmp.ne.s32.totalorder %s46, %s47
    %p61 = scmp.eq.s32.totalorder %s27, 1
    %p62 = por %p60, %p61
    %p64 = scmp.ne.s32.totalorder %s47, %s63
    %p65 = scmp.eq.s32.totalorder %s27, 0
    %p66 = por %p64, %p65
    %s68 = sadd.s32 %s67, 1
    %p71 = scmp.eq.s32.totalorder %s21, 1
    %p72 = scmp.ne.s32.totalorder %s67, %s69
    %p73 = scmp.eq.s32.totalorder %s21, 0
    %p74 = por %p72, %p73
    %p75 = scmp.ne.s32.totalorder %s67, %s69
    %p76 = scmp.eq.s32.totalorder %s26, 1
    %p77 = por %p75, %p76
    %p78 = scmp.ne.s32.totalorder %s69, %s70
    %p79 = scmp.eq.s32.totalorder %s26, 0
    %p80 = por %p78, %p79
    %p81 = scmp.ne.s32.totalorder %s69, %s70
    %p82 = scmp.eq.s32.totalorder %s27, 1
    %p83 = por %p81, %p82
    %p85 = scmp.ne.s32.totalorder %s70, %s84
    %p86 = scmp.eq.s32.totalorder %s27, 0
    %p87 = por %p85, %p86
    %s89 = sadd.s32 %s88, 1
    %p92 = scmp.eq.s32.totalorder %s21, 1
    %p93 = scmp.ne.s32.totalorder %s88, %s90
    %p94 = scmp.eq.s32.totalorder %s21, 0
    %p95 = por %p93, %p94
    %p96 = scmp.ne.s32.totalorder %s88, %s90
    %p97 = scmp.eq.s32.totalorder %s26, 1
    %p98 = por %p96, %p97
    %p99 = scmp.ne.s32.totalorder %s90, %s91
    %p100 = scmp.eq.s32.totalorder %s26, 0
    %p101 = por %p99, %p100
    %p102 = scmp.ne.s32.totalorder %s90, %s91
    %p103 = scmp.eq.s32.totalorder %s27, 1
    %p104 = por %p102, %p103
    %p106 = scmp.ne.s32.totalorder %s91, %s105
    %p107 = scmp.eq.s32.totalorder %s27, 0
    %p108 = por %p106, %p107
    %s109 = ssub.s32 %s29, %s36
    %p110 = scmp.eq.s32.totalorder %s109, 0
    %s112 = sadd.s32 %s111, 1
    %s113 = scalar_select %p110, %s111, %s112
    %p116 = pneg %p110
    %p117 = scmp.eq.s32.totalorder %s21, 1
    %p118 = por %p116, %p117
    %p119 = scmp.ne.s32.totalorder %s111, %s114
    %p120 = scmp.eq.s32.totalorder %s21, 0
    %p121 = por %p119, %p120
    %p122 = scmp.ne.s32.totalorder %s111, %s114
    %p123 = scmp.eq.s32.totalorder %s26, 1
    %p124 = por %p122, %p123
    %p125 = scmp.ne.s32.totalorder %s114, %s115
    %p126 = scmp.eq.s32.totalorder %s26, 0
    %p127 = por %p125, %p126
    %p128 = scmp.ne.s32.totalorder %s114, %s115
    %p129 = scmp.eq.s32.totalorder %s27, 1
    %p130 = por %p128, %p129
    %p132 = scmp.ne.s32.totalorder %s115, %s131
    %p133 = scmp.eq.s32.totalorder %s27, 0
    %p134 = por %p132, %p133
    %s135 = ssub.s32 %s29, %s36
    %p136 = scmp.eq.s32.totalorder %s135, 0
    %s138 = sadd.s32 %s137, 1
    %s139 = scalar_select %p136, %s137, %s138
    %p142 = pneg %p136
    %p143 = scmp.eq.s32.totalorder %s21, 1
    %p144 = por %p142, %p143
    %p145 = scmp.ne.s32.totalorder %s137, %s140
    %p146 = scmp.eq.s32.totalorder %s21, 0
    %p147 = por %p145, %p146
    %p148 = scmp.ne.s32.totalorder %s137, %s140
    %p149 = scmp.eq.s32.totalorder %s26, 1
    %p150 = por %p148, %p149
    %p151 = scmp.ne.s32.totalorder %s140, %s141
    %p152 = scmp.eq.s32.totalorder %s26, 0
    %p153 = por %p151, %p152
    %p154 = scmp.ne.s32.totalorder %s140, %s141
    %p155 = scmp.eq.s32.totalorder %s27, 1
    %p156 = por %p154, %p155
    %p158 = scmp.ne.s32.totalorder %s141, %s157
    %p159 = scmp.eq.s32.totalorder %s27, 0
    %p160 = por %p158, %p159
    %s161 = ssub.s32 %s29, %s36
    %p162 = scmp.eq.s32.totalorder %s161, 0
    %s164 = sadd.s32 %s163, 1
    %s165 = scalar_select %p162, %s163, %s164
    %p168 = pneg %p162
    %p169 = scmp.eq.s32.totalorder %s21, 1
    %p170 = por %p168, %p169
    %p171 = scmp.ne.s32.totalorder %s163, %s166
    %p172 = scmp.eq.s32.totalorder %s21, 0
    %p173 = por %p171, %p172
    %p174 = scmp.ne.s32.totalorder %s163, %s166
    %p175 = scmp.eq.s32.totalorder %s26, 1
    %p176 = por %p174, %p175
    %p177 = scmp.ne.s32.totalorder %s166, %s167
    %p178 = scmp.eq.s32.totalorder %s26, 0
    %p179 = por %p177, %p178
    %p180 = scmp.ne.s32.totalorder %s166, %s167
    %p181 = scmp.eq.s32.totalorder %s27, 1
    %p182 = por %p180, %p181
    %p184 = scmp.ne.s32.totalorder %s167, %s183
    %p185 = scmp.eq.s32.totalorder %s27, 0
    %p186 = por %p184, %p185
    %s187 = ssub.s32 %s29, %s36
    %p188 = scmp.eq.s32.totalorder %s187, 0
    %s190 = sadd.s32 %s189, 1
    %s191 = scalar_select %p188, %s189, %s190
    %p194 = pneg %p188
    %p195 = scmp.eq.s32.totalorder %s21, 1
    %p196 = por %p194, %p195
    %p197 = scmp.ne.s32.totalorder %s189, %s192
    %p198 = scmp.eq.s32.totalorder %s21, 0
    %p199 = por %p197, %p198
    %p200 = scmp.ne.s32.totalorder %s189, %s192
    %p201 = scmp.eq.s32.totalorder %s26, 1
    %p202 = por %p200, %p201
    %p203 = scmp.ne.s32.totalorder %s192, %s193
    %p204 = scmp.eq.s32.totalorder %s26, 0
    %p205 = por %p203, %p204
    %p206 = scmp.ne.s32.totalorder %s192, %s193
    %p207 = scmp.eq.s32.totalorder %s27, 1
    %p208 = por %p206, %p207
    %p210 = scmp.ne.s32.totalorder %s193, %s209
    %p211 = scmp.eq.s32.totalorder %s27, 0
    %p212 = por %p210, %p211
    %s213 = ssub.s32 %s29, %s36
    %p214 = scmp.eq.s32.totalorder %s213, 0
    %s216 = sadd.s32 %s215, 1
    %s217 = scalar_select %p214, %s215, %s216
    %p220 = pneg %p214
    %p221 = scmp.eq.s32.totalorder %s21, 1
    %p222 = por %p220, %p221
    %p223 = scmp.ne.s32.totalorder %s215, %s218
    %p224 = scmp.eq.s32.totalorder %s21, 0
    %p225 = por %p223, %p224
    %p226 = scmp.ne.s32.totalorder %s215, %s218
    %p227 = scmp.eq.s32.totalorder %s26, 1
    %p228 = por %p226, %p227
    %p229 = scmp.ne.s32.totalorder %s218, %s219
    %p230 = scmp.eq.s32.totalorder %s26, 0
    %p231 = por %p229, %p230
    %p232 = scmp.ne.s32.totalorder %s218, %s219
    %p233 = scmp.eq.s32.totalorder %s27, 1
    %p234 = por %p232, %p233
    %p236 = scmp.ne.s32.totalorder %s219, %s235
    %p237 = scmp.eq.s32.totalorder %s27, 0
    %p238 = por %p236, %p237
    %s239 = ssub.s32 %s29, %s36
    %p240 = scmp.eq.s32.totalorder %s239, 0
    %s242 = sadd.s32 %s241, 1
    %s243 = scalar_select %p240, %s241, %s242
    %p246 = pneg %p240
    %p247 = scmp.eq.s32.totalorder %s21, 1
    %p248 = por %p246, %p247
    %p249 = scmp.ne.s32.totalorder %s241, %s244
    %p250 = scmp.eq.s32.totalorder %s21, 0
    %p251 = por %p249, %p250
    %p252 = scmp.ne.s32.totalorder %s241, %s244
    %p253 = scmp.eq.s32.totalorder %s26, 1
    %p254 = por %p252, %p253
    %p255 = scmp.ne.s32.totalorder %s244, %s245
    %p256 = scmp.eq.s32.totalorder %s26, 0
    %p257 = por %p255, %p256
    %p258 = scmp.ne.s32.totalorder %s244, %s245
    %p259 = scmp.eq.s32.totalorder %s27, 1
    %p260 = por %p258, %p259
    %p262 = scmp.ne.s32.totalorder %s245, %s261
    %p263 = scmp.eq.s32.totalorder %s27, 0
    %p264 = por %p262, %p263
    %s265 = ssub.s32 %s29, %s36
    %p266 = scmp.eq.s32.totalorder %s265, 0
    %s268 = sadd.s32 %s267, 1
    %s269 = scalar_select %p266, %s267, %s268
    %p272 = pneg %p266
    %p273 = scmp.eq.s32.totalorder %s21, 1
    %p274 = por %p272, %p273
    %p275 = scmp.ne.s32.totalorder %s267, %s270
    %p276 = scmp.eq.s32.totalorder %s21, 0
    %p277 = por %p275, %p276
    %p278 = scmp.ne.s32.totalorder %s267, %s270
    %p279 = scmp.eq.s32.totalorder %s26, 1
    %p280 = por %p278, %p279
    %p281 = scmp.ne.s32.totalorder %s270, %s271
    %p282 = scmp.eq.s32.totalorder %s26, 0
    %p283 = por %p281, %p282
    %p284 = scmp.ne.s32.totalorder %s270, %s271
    %p285 = scmp.eq.s32.totalorder %s27, 1
    %p286 = por %p284, %p285
    %p288 = scmp.ne.s32.totalorder %s271, %s287
    %p289 = scmp.eq.s32.totalorder %s27, 0
    %p290 = por %p288, %p289
    %s291 = ssub.s32 %s29, %s36
    %p292 = scmp.eq.s32.totalorder %s291, 0
    %s294 = sadd.s32 %s293, 1
    %s295 = scalar_select %p292, %s293, %s294
    %p298 = pneg %p292
    %p299 = scmp.eq.s32.totalorder %s21, 1
    %p300 = por %p298, %p299
    %p301 = scmp.ne.s32.totalorder %s293, %s296
    %p302 = scmp.eq.s32.totalorder %s21, 0
    %p303 = por %p301, %p302
    %p304 = scmp.ne.s32.totalorder %s293, %s296
    %p305 = scmp.eq.s32.totalorder %s26, 1
    %p306 = por %p304, %p305
    %p307 = scmp.ne.s32.totalorder %s296, %s297
    %p308 = scmp.eq.s32.totalorder %s26, 0
    %p309 = por %p307, %p308
    %p310 = scmp.ne.s32.totalorder %s296, %s297
    %p311 = scmp.eq.s32.totalorder %s27, 1
    %p312 = por %p310, %p311
    %p314 = scmp.ne.s32.totalorder %s297, %s313
    %p315 = scmp.eq.s32.totalorder %s27, 0
    %p316 = por %p314, %p315
    %s317 = ssub.s32 %s29, %s36
    %p318 = scmp.eq.s32.totalorder %s317, 0
    %s320 = sadd.s32 %s319, 1
    %s321 = scalar_select %p318, %s319, %s320
    %p324 = pneg %p318
    %p325 = scmp.eq.s32.totalorder %s21, 1
    %p326 = por %p324, %p325
    %p327 = scmp.ne.s32.totalorder %s319, %s322
    %p328 = scmp.eq.s32.totalorder %s21, 0
    %p329 = por %p327, %p328
    %p330 = scmp.ne.s32.totalorder %s319, %s322
    %p331 = scmp.eq.s32.totalorder %s26, 1
    %p332 = por %p330, %p331
    %p333 = scmp.ne.s32.totalorder %s322, %s323
    %p334 = scmp.eq.s32.totalorder %s26, 0
    %p335 = por %p333, %p334
    %p336 = scmp.ne.s32.totalorder %s322, %s323
    %p337 = scmp.eq.s32.totalorder %s27, 1
    %p338 = por %p336, %p337
    %p340 = scmp.ne.s32.totalorder %s323, %s339
    %p341 = scmp.eq.s32.totalorder %s27, 0
    %p342 = por %p340, %p341
    %s343 = ssub.s32 %s29, %s36
    %p344 = scmp.eq.s32.totalorder %s343, 0
    %s346 = sadd.s32 %s345, 1
    %s347 = scalar_select %p344, %s345, %s346
    %p350 = pneg %p344
    %p351 = scmp.eq.s32.totalorder %s21, 1
    %p352 = por %p350, %p351
    %p353 = scmp.ne.s32.totalorder %s345, %s348
    %p354 = scmp.eq.s32.totalorder %s21, 0
    %p355 = por %p353, %p354
    %p356 = scmp.ne.s32.totalorder %s345, %s348
    %p357 = scmp.eq.s32.totalorder %s26, 1
    %p358 = por %p356, %p357
    %p359 = scmp.ne.s32.totalorder %s348, %s349
    %p360 = scmp.eq.s32.totalorder %s26, 0
    %p361 = por %p359, %p360
    %p362 = scmp.ne.s32.totalorder %s348, %s349
    %p363 = scmp.eq.s32.totalorder %s27, 1
    %p364 = por %p362, %p363
    %p366 = scmp.ne.s32.totalorder %s349, %s365
    %p367 = scmp.eq.s32.totalorder %s27, 0
    %p368 = por %p366, %p367
    %s369 = ssub.s32 %s29, %s36
    %p370 = scmp.eq.s32.totalorder %s369, 0
    %s372 = sadd.s32 %s371, 1
    %s373 = scalar_select %p370, %s371, %s372
    %p376 = pneg %p370
    %p377 = scmp.eq.s32.totalorder %s21, 1
    %p378 = por %p376, %p377
    %p379 = scmp.ne.s32.totalorder %s371, %s374
    %p380 = scmp.eq.s32.totalorder %s21, 0
    %p381 = por %p379, %p380
    %p382 = scmp.ne.s32.totalorder %s371, %s374
    %p383 = scmp.eq.s32.totalorder %s26, 1
    %p384 = por %p382, %p383
    %p385 = scmp.ne.s32.totalorder %s374, %s375
    %p386 = scmp.eq.s32.totalorder %s26, 0
    %p387 = por %p385, %p386
    %p388 = scmp.ne.s32.totalorder %s374, %s375
    %p389 = scmp.eq.s32.totalorder %s27, 1
    %p390 = por %p388, %p389
    %p392 = scmp.ne.s32.totalorder %s375, %s391
    %p393 = scmp.eq.s32.totalorder %s27, 0
    %p394 = por %p392, %p393
    %s395 = ssub.s32 %s29, %s36
    %p396 = scmp.eq.s32.totalorder %s395, 0
    %s398 = sadd.s32 %s397, 1
    %s399 = scalar_select %p396, %s397, %s398
    %p402 = pneg %p396
    %p403 = scmp.eq.s32.totalorder %s21, 1
    %p404 = por %p402, %p403
    %p405 = scmp.ne.s32.totalorder %s397, %s400
    %p406 = scmp.eq.s32.totalorder %s21, 0
    %p407 = por %p405, %p406
    %p408 = scmp.ne.s32.totalorder %s397, %s400
    %p409 = scmp.eq.s32.totalorder %s26, 1
    %p410 = por %p408, %p409
    %p411 = scmp.ne.s32.totalorder %s400, %s401
    %p412 = scmp.eq.s32.totalorder %s26, 0
    %p413 = por %p411, %p412
    %p414 = scmp.ne.s32.totalorder %s400, %s401
    %p415 = scmp.eq.s32.totalorder %s27, 1
    %p416 = por %p414, %p415
    %p418 = scmp.ne.s32.totalorder %s401, %s417
    %p419 = scmp.eq.s32.totalorder %s27, 0
    %p420 = por %p418, %p419
    %s421 = ssub.s32 %s28, %s40
    %p422 = scmp.eq.s32.totalorder %s421, 0
    %s424 = sadd.s32 %s423, 1
    %s425 = scalar_select %p422, %s423, %s424
    %p428 = pneg %p422
    %p429 = scmp.eq.s32.totalorder %s21, 1
    %p430 = por %p428, %p429
    %p431 = scmp.ne.s32.totalorder %s423, %s426
    %p432 = scmp.eq.s32.totalorder %s21, 0
    %p433 = por %p431, %p432
    %p434 = scmp.ne.s32.totalorder %s423, %s426
    %p435 = scmp.eq.s32.totalorder %s26, 1
    %p436 = por %p434, %p435
    %p437 = scmp.ne.s32.totalorder %s426, %s427
    %p438 = scmp.eq.s32.totalorder %s26, 0
    %p439 = por %p437, %p438
    %p440 = scmp.ne.s32.totalorder %s426, %s427
    %p441 = scmp.eq.s32.totalorder %s27, 1
    %p442 = por %p440, %p441
    %p444 = scmp.ne.s32.totalorder %s427, %s443
    %p445 = scmp.eq.s32.totalorder %s27, 0
    %p446 = por %p444, %p445
    %p447 = scmp.le.s32.totalorder 1, %s21
    %p448 = scmp.lt.s32.totalorder %s21, 3
    %p449 = pnand %p447, %p448
    %p450 = pneg %p449
    // Predicated region
    $region9: #{vit_forward.4} parent=5 // pred_check
      _
    $region10: #{vit_forward.4} parent=5 // pred_check_branch
      %452 = sbr.rel (%p449) target = $region12
    $region11: #{vit_forward.4} parent=5 // pred_region
      %s453 = ssub.s32 %s21, 1
      // Predicated region
      $region13: #{vit_forward.4} parent=11 // pred_check
        %p454 = pneg %p59
      $region14: #{vit_forward.4} parent=11 // pred_check_branch
        %456 = sbr.rel (%p454) target = $region16
      $region15: #{vit_forward.4} parent=11 // pred_region
        %s457 = smul.u32 3, %s30
        %p458 = scmp.lt.s32.totalorder %s457, 2
        %s459 = scalar_select %p458, %s457, 2
        %s460 = smul.addr %s459, 8
        %s461 = scalar_lea.vmem %s0, %s460
        %s462 = smul.u32 3, %s30
      $region16: #{vit_forward.4} parent=11 // pred_fallthru
        _
      // Predicated region
      $region17: #{vit_forward.4} parent=11 // pred_check
        %p463 = pneg %p80
      $region18: #{vit_forward.4} parent=11 // pred_check_branch
        %465 = sbr.rel (%p463) target = $region20
      $region19: #{vit_forward.4} parent=11 // pred_region
        _
      $region20: #{vit_forward.4} parent=11 // pred_fallthru
        _
      // Predicated region
      $region21: #{vit_forward.4} parent=11 // pred_check
        %p466 = pneg %p101
      $region22: #{vit_forward.4} parent=11 // pred_check_branch
        %468 = sbr.rel (%p466) target = $region24
      $region23: #{vit_forward.4} parent=11 // pred_region
        _
      $region24: #{vit_forward.4} parent=11 // pred_fallthru
        _
    $region12: #{vit_forward.4} parent=5 // pred_fallthru
      _
    %p469 = scmp.lt.s32.totalorder %s21, 2
    // Predicated region
    $region25: #{vit_forward.4} parent=5 // pred_check
      %p470 = pneg %p469
    $region26: #{vit_forward.4} parent=5 // pred_check_branch
      %472 = sbr.rel (%p470) target = $region28
    $region27: #{vit_forward.4} parent=5 // pred_region
      // Predicated region
      $region29: #{vit_forward.4} parent=27 // pred_check
        %p473 = pneg %p121
      $region30: #{vit_forward.4} parent=27 // pred_check_branch
        %475 = sbr.rel (%p473) target = $region32
      $region31: #{vit_forward.4} parent=27 // pred_region
        %p476 = scmp.lt.s32.totalorder %s29, 1
        %s477 = scalar_select %p476, %s29, 1
        %s478 = smul.addr %s477, 16
        %s479 = smul.addr %s478, 4
        %s480 = scalar_lea.vmem %s3, %s479
      $region32: #{vit_forward.4} parent=27 // pred_fallthru
        _
      // Predicated region
      $region33: #{vit_forward.4} parent=27 // pred_check
        %p481 = pneg %p147
      $region34: #{vit_forward.4} parent=27 // pred_check_branch
        %483 = sbr.rel (%p481) target = $region36
      $region35: #{vit_forward.4} parent=27 // pred_region
        %p484 = scmp.lt.s32.totalorder %s29, 1
        %s485 = scalar_select %p484, %s29, 1
        %s486 = smul.addr %s485, 2
        %s487 = scalar_lea.vmem %s4, %s486
      $region36: #{vit_forward.4} parent=27 // pred_fallthru
        _
      // Predicated region
      $region37: #{vit_forward.4} parent=27 // pred_check
        %p488 = pneg %p173
      $region38: #{vit_forward.4} parent=27 // pred_check_branch
        %490 = sbr.rel (%p488) target = $region40
      $region39: #{vit_forward.4} parent=27 // pred_region
        %p491 = scmp.lt.s32.totalorder %s29, 1
        %s492 = scalar_select %p491, %s29, 1
        %s493 = smul.addr %s492, 8
        %s494 = smul.addr %s493, 4
        %s495 = scalar_lea.vmem %s5, %s494
      $region40: #{vit_forward.4} parent=27 // pred_fallthru
        _
      // Predicated region
      $region41: #{vit_forward.4} parent=27 // pred_check
        %p496 = pneg %p199
      $region42: #{vit_forward.4} parent=27 // pred_check_branch
        %498 = sbr.rel (%p496) target = $region44
      $region43: #{vit_forward.4} parent=27 // pred_region
        %p499 = scmp.lt.s32.totalorder %s29, 1
        %s500 = scalar_select %p499, %s29, 1
        %s501 = scalar_lea.vmem %s6, %s500
      $region44: #{vit_forward.4} parent=27 // pred_fallthru
        _
      // Predicated region
      $region45: #{vit_forward.4} parent=27 // pred_check
        %p502 = pneg %p225
      $region46: #{vit_forward.4} parent=27 // pred_check_branch
        %504 = sbr.rel (%p502) target = $region48
      $region47: #{vit_forward.4} parent=27 // pred_region
        %p505 = scmp.lt.s32.totalorder %s29, 1
        %s506 = scalar_select %p505, %s29, 1
        %s507 = scalar_lea.vmem %s7, %s506
      $region48: #{vit_forward.4} parent=27 // pred_fallthru
        _
      // Predicated region
      $region49: #{vit_forward.4} parent=27 // pred_check
        %p508 = pneg %p251
      $region50: #{vit_forward.4} parent=27 // pred_check_branch
        %510 = sbr.rel (%p508) target = $region52
      $region51: #{vit_forward.4} parent=27 // pred_region
        %p511 = scmp.lt.s32.totalorder %s29, 1
        %s512 = scalar_select %p511, %s29, 1
        %s513 = scalar_lea.vmem %s8, %s512
      $region52: #{vit_forward.4} parent=27 // pred_fallthru
        _
      // Predicated region
      $region53: #{vit_forward.4} parent=27 // pred_check
        %p514 = pneg %p277
      $region54: #{vit_forward.4} parent=27 // pred_check_branch
        %516 = sbr.rel (%p514) target = $region56
      $region55: #{vit_forward.4} parent=27 // pred_region
        %p517 = scmp.lt.s32.totalorder %s29, 1
        %s518 = scalar_select %p517, %s29, 1
        %s519 = smul.addr %s518, 16
        %s520 = smul.addr %s519, 4
        %s521 = scalar_lea.vmem %s9, %s520
      $region56: #{vit_forward.4} parent=27 // pred_fallthru
        _
      // Predicated region
      $region57: #{vit_forward.4} parent=27 // pred_check
        %p522 = pneg %p303
      $region58: #{vit_forward.4} parent=27 // pred_check_branch
        %524 = sbr.rel (%p522) target = $region60
      $region59: #{vit_forward.4} parent=27 // pred_region
        %p525 = scmp.lt.s32.totalorder %s29, 1
        %s526 = scalar_select %p525, %s29, 1
        %s527 = smul.addr %s526, 2
        %s528 = scalar_lea.vmem %s10, %s527
      $region60: #{vit_forward.4} parent=27 // pred_fallthru
        _
      // Predicated region
      $region61: #{vit_forward.4} parent=27 // pred_check
        %p529 = pneg %p329
      $region62: #{vit_forward.4} parent=27 // pred_check_branch
        %531 = sbr.rel (%p529) target = $region64
      $region63: #{vit_forward.4} parent=27 // pred_region
        %p532 = scmp.lt.s32.totalorder %s29, 1
        %s533 = scalar_select %p532, %s29, 1
        %s534 = smul.addr %s533, 32
        %s535 = smul.addr %s534, 4
        %s536 = scalar_lea.vmem %s11, %s535
      $region64: #{vit_forward.4} parent=27 // pred_fallthru
        _
      // Predicated region
      $region65: #{vit_forward.4} parent=27 // pred_check
        %p537 = pneg %p355
      $region66: #{vit_forward.4} parent=27 // pred_check_branch
        %539 = sbr.rel (%p537) target = $region68
      $region67: #{vit_forward.4} parent=27 // pred_region
        %p540 = scmp.lt.s32.totalorder %s29, 1
        %s541 = scalar_select %p540, %s29, 1
        %s542 = scalar_lea.vmem %s12, %s541
      $region68: #{vit_forward.4} parent=27 // pred_fallthru
        _
      // Predicated region
      $region69: #{vit_forward.4} parent=27 // pred_check
        %p543 = pneg %p381
      $region70: #{vit_forward.4} parent=27 // pred_check_branch
        %545 = sbr.rel (%p543) target = $region72
      $region71: #{vit_forward.4} parent=27 // pred_region
        %p546 = scmp.lt.s32.totalorder %s29, 1
        %s547 = scalar_select %p546, %s29, 1
        %s548 = scalar_lea.vmem %s13, %s547
      $region72: #{vit_forward.4} parent=27 // pred_fallthru
        _
      // Predicated region
      $region73: #{vit_forward.4} parent=27 // pred_check
        %p549 = pneg %p407
      $region74: #{vit_forward.4} parent=27 // pred_check_branch
        %551 = sbr.rel (%p549) target = $region76
      $region75: #{vit_forward.4} parent=27 // pred_region
        %p552 = scmp.lt.s32.totalorder %s29, 1
        %s553 = scalar_select %p552, %s29, 1
        %s554 = scalar_lea.vmem %s14, %s553
      $region76: #{vit_forward.4} parent=27 // pred_fallthru
        _
    $region28: #{vit_forward.4} parent=5 // pred_fallthru
      _
    %p555 = scmp.le.s32.totalorder 1, %s21
    %p556 = scmp.lt.s32.totalorder %s21, 3
    %p557 = pnand %p555, %p556
    %p558 = pneg %p557
    // Predicated region
    $region77: #{vit_forward.4} parent=5 // pred_check
      _
    $region78: #{vit_forward.4} parent=5 // pred_check_branch
      %560 = sbr.rel (%p557) target = $region80
    $region79: #{vit_forward.4} parent=5 // pred_region
      %s561 = ssub.s32 %s21, 1
      %s562 = smul.u32 3, %s30
      %p563 = scmp.lt.s32.totalorder %s562, 2
      %s564 = scalar_select %p563, %s562, 2
      %s565 = smul.addr %s564, 8
      %s566 = scalar_lea.vmem %s0, %s565
      %p567 = pneg %p59
      %p568 = pneg %p56
      %p569 = pneg %p80
      %p570 = pneg %p77
      %p571 = pneg %p101
      %p572 = pneg %p98
      %p573 = scmp.lt.s32.totalorder %s31, 1
      %s574 = scalar_select %p573, %s31, 1
      %s575 = smul.addr %s574, 16
      %s576 = smul.addr %s575, 4
      %s577 = scalar_lea.vmem %s3, %s576
      %p578 = pneg %p127
      %p579 = pneg %p124
      %p580 = scmp.lt.s32.totalorder %s31, 1
      %s581 = scalar_select %p580, %s31, 1
      %s582 = smul.addr %s581, 2
      %s583 = scalar_lea.vmem %s4, %s582
      %p584 = pneg %p153
      %p585 = pneg %p150
      %p586 = scmp.lt.s32.totalorder %s31, 1
      %s587 = scalar_select %p586, %s31, 1
      %s588 = smul.addr %s587, 8
      %s589 = smul.addr %s588, 4
      %s590 = scalar_lea.vmem %s5, %s589
      %p591 = pneg %p179
      %p592 = pneg %p176
      %p593 = scmp.lt.s32.totalorder %s31, 1
      %s594 = scalar_select %p593, %s31, 1
      %s595 = scalar_lea.vmem %s6, %s594
      %p596 = pneg %p205
      %p597 = pneg %p202
      %p598 = scmp.lt.s32.totalorder %s31, 1
      %s599 = scalar_select %p598, %s31, 1
      %s600 = scalar_lea.vmem %s7, %s599
      %p601 = pneg %p231
      %p602 = pneg %p228
      %p603 = scmp.lt.s32.totalorder %s31, 1
      %s604 = scalar_select %p603, %s31, 1
      %s605 = scalar_lea.vmem %s8, %s604
      %p606 = pneg %p257
      %p607 = pneg %p254
      %p608 = scmp.lt.s32.totalorder %s31, 1
      %s609 = scalar_select %p608, %s31, 1
      %s610 = smul.addr %s609, 16
      %s611 = smul.addr %s610, 4
      %s612 = scalar_lea.vmem %s9, %s611
      %p613 = pneg %p283
      %p614 = pneg %p280
      %p615 = scmp.lt.s32.totalorder %s31, 1
      %s616 = scalar_select %p615, %s31, 1
      %s617 = smul.addr %s616, 2
      %s618 = scalar_lea.vmem %s10, %s617
      %p619 = pneg %p309
      %p620 = pneg %p306
      %p621 = scmp.lt.s32.totalorder %s31, 1
      %s622 = scalar_select %p621, %s31, 1
      %s623 = smul.addr %s622, 32
      %s624 = smul.addr %s623, 4
      %s625 = scalar_lea.vmem %s11, %s624
      %p626 = pneg %p335
      %p627 = pneg %p332
      %p628 = scmp.lt.s32.totalorder %s31, 1
      %s629 = scalar_select %p628, %s31, 1
      %s630 = scalar_lea.vmem %s12, %s629
      %p631 = pneg %p361
      %p632 = pneg %p358
      %p633 = scmp.lt.s32.totalorder %s31, 1
      %s634 = scalar_select %p633, %s31, 1
      %s635 = scalar_lea.vmem %s13, %s634
      %p636 = pneg %p387
      %p637 = pneg %p384
      %p638 = scmp.lt.s32.totalorder %s31, 1
      %s639 = scalar_select %p638, %s31, 1
      %s640 = scalar_lea.vmem %s14, %s639
      %p641 = pneg %p413
      %p642 = pneg %p410
      %p643 = pneg %p439
      %p644 = pneg %p436
      %s645 = smul.u32 3, %s30
      %p646 = scmp.lt.s32.totalorder %s645, 2
      %s647 = scalar_select %p646, %s645, 2
      %s648 = smul.addr %s647, 8
      %s649 = scalar_lea.vmem %s15, %s648
      %s650 = smul.u32 3, %s30
      %p651 = scmp.lt.s32.totalorder %s650, 2
      %s652 = scalar_select %p651, %s650, 2
      %s653 = smul.addr %s652, 8
      %s654 = scalar_lea.vmem %s0, %s653
      %s655 = smul.u32 3, %s30
      %p656 = scmp.lt.s32.totalorder %s31, 1
      %s657 = scalar_select %p656, %s31, 1
      %s658 = smul.addr %s657, 16
      %s659 = smul.addr %s658, 4
      %s660 = scalar_lea.vmem %s3, %s659
      %p661 = scmp.lt.s32.totalorder %s31, 1
      %s662 = scalar_select %p661, %s31, 1
      %s663 = smul.addr %s662, 2
      %s664 = scalar_lea.vmem %s4, %s663
      %p665 = scmp.lt.s32.totalorder %s31, 1
      %s666 = scalar_select %p665, %s31, 1
      %s667 = smul.addr %s666, 8
      %s668 = smul.addr %s667, 4
      %s669 = scalar_lea.vmem %s5, %s668
      %p670 = scmp.lt.s32.totalorder %s31, 1
      %s671 = scalar_select %p670, %s31, 1
      %s672 = scalar_lea.vmem %s6, %s671
      %p673 = scmp.lt.s32.totalorder %s31, 1
      %s674 = scalar_select %p673, %s31, 1
      %s675 = scalar_lea.vmem %s7, %s674
      %p676 = scmp.lt.s32.totalorder %s31, 1
      %s677 = scalar_select %p676, %s31, 1
      %s678 = scalar_lea.vmem %s8, %s677
      %p679 = scmp.lt.s32.totalorder %s31, 1
      %s680 = scalar_select %p679, %s31, 1
      %s681 = smul.addr %s680, 16
      %s682 = smul.addr %s681, 4
      %s683 = scalar_lea.vmem %s9, %s682
      %p684 = scmp.lt.s32.totalorder %s31, 1
      %s685 = scalar_select %p684, %s31, 1
      %s686 = smul.addr %s685, 2
      %s687 = scalar_lea.vmem %s10, %s686
      %p688 = scmp.lt.s32.totalorder %s31, 1
      %s689 = scalar_select %p688, %s31, 1
      %s690 = smul.addr %s689, 32
      %s691 = smul.addr %s690, 4
      %s692 = scalar_lea.vmem %s11, %s691
      %p693 = scmp.lt.s32.totalorder %s31, 1
      %s694 = scalar_select %p693, %s31, 1
      %s695 = scalar_lea.vmem %s12, %s694
      %p696 = scmp.lt.s32.totalorder %s31, 1
      %s697 = scalar_select %p696, %s31, 1
      %s698 = scalar_lea.vmem %s13, %s697
      %p699 = scmp.lt.s32.totalorder %s31, 1
      %s700 = scalar_select %p699, %s31, 1
      %s701 = scalar_lea.vmem %s14, %s700
      %s702 = smul.u32 3, %s30
      %p703 = scmp.lt.s32.totalorder %s702, 2
      %s704 = scalar_select %p703, %s702, 2
      %s705 = smul.addr %s704, 8
      %s706 = scalar_lea.vmem %s15, %s705
      %s707 = smul.u32 3, %s30
      %p709 = scmp.eq.s32.totalorder %s31, 0
      // Predicated region
      $region81: #{vit_forward.4} parent=79 // pred_check
        %p710 = pneg %p709
      $region82: #{vit_forward.4} parent=79 // pred_check_branch
        %712 = sbr.rel (%p710) target = $region84
      $region83: #{vit_forward.4} parent=79 // pred_region
        %v713 = vld [vmem:[%s654] sm:$0xff]
        %v714 = vld [vmem:[%s654 + $0x8] sm:$0xff]
        %v715 = vld [vmem:[%s654 + $0x10] sm:$0xff]
        %v716 = vld [vmem:[%s654 + $0x18] sm:$0xff]
        %v717 = vld [vmem:[%s654 + $0x20] sm:$0xff]
        %v718 = vld [vmem:[%s654 + $0x28] sm:$0xff]
        %vm719 = vcmask 523264
        %720 = vst.msk [vmem:[%s706] sm:$0xff] %vm719, %v713
        %721 = vst.msk [vmem:[%s706 + $0x8] sm:$0xff] %vm719, %v714
        %722 = vst.msk [vmem:[%s706 + $0x10] sm:$0xff] %vm719, %v715
        %723 = vst.msk [vmem:[%s706 + $0x18] sm:$0xff] %vm719, %v716
        %724 = vst.msk [vmem:[%s706 + $0x20] sm:$0xff] %vm719, %v717
        %725 = vst.msk [vmem:[%s706 + $0x28] sm:$0xff] %vm719, %v718
      $region84: #{vit_forward.4} parent=79 // pred_fallthru
        _
      %v726 = vld [vmem:[%s706] sm:$0xff]
      %v727 = vld [vmem:[%s706 + $0x8] sm:$0xff]
      %v728 = vld [vmem:[%s706 + $0x10] sm:$0xff]
      %v729 = vld [vmem:[%s706 + $0x18] sm:$0xff]
      %v730 = vld [vmem:[%s706 + $0x20] sm:$0xff]
      %v731 = vld [vmem:[%s706 + $0x28] sm:$0xff]
      %v732 = vld [vmem:[%s1] sm:$0xf]
      %v733 = vld [vmem:[%s1 + $0x4] sm:$0xf]
      %v734 = vld [vmem:[%s1 + $0x8] sm:$0xf]
      %v735 = vld [vmem:[%s1 + $0xc] sm:$0xf]
      %v736 = vld [vmem:[%s1 + $0x10] sm:$0xf]
      %v737 = vld [vmem:[%s1 + $0x14] sm:$0xf]
      %v738 = vld [vmem:[%s1 + $0x18] sm:$0xf]
      %v739 = vld [vmem:[%s1 + $0x1c] sm:$0xf]
      %v740 = vld [vmem:[%s2] sm:$0x3]
      %v741 = vpack.c.bf16 %v727, %v726
      %v742 = vpack.c.bf16 %v729, %v728
      %v743 = vpack.c.bf16 %v731, %v730
      %v744 = vld [vmem:[%s660] sm:$0xff]
      %v745 = vld [vmem:[%s660 + $0x8] sm:$0xff]
      %v746 = vld [vmem:[%s660 + $0x10] sm:$0xff]
      %v747 = vld [vmem:[%s660 + $0x18] sm:$0xff]
      %v748 = vld [vmem:[%s660 + $0x20] sm:$0xff]
      %v749 = vld [vmem:[%s660 + $0x28] sm:$0xff]
      %v750 = vld [vmem:[%s660 + $0x30] sm:$0xff]
      %v751 = vld [vmem:[%s660 + $0x38] sm:$0xff]
      %v752 = vld [vmem:[%s664] sm:$0x3]
      %v754 = vperm.slane %v752, 0
      %v755 = vperm.slane %v752, 1
      %v766 = vunpack.c.l.b16 %v744
      %v767 = vunpack.c.h.b16 %v744
      %v768 = vunpack.c.l.b16 %v745
      %v769 = vunpack.c.h.b16 %v745
      %v770 = vunpack.c.l.b16 %v746
      %v771 = vunpack.c.h.b16 %v746
      %v772 = vunpack.c.l.b16 %v747
      %v773 = vunpack.c.h.b16 %v747
      %v774 = vunpack.c.l.b16 %v748
      %v775 = vunpack.c.h.b16 %v748
      %v776 = vunpack.c.l.b16 %v749
      %v777 = vunpack.c.h.b16 %v749
      %v778 = vunpack.c.l.b16 %v750
      %v779 = vunpack.c.h.b16 %v750
      %v780 = vunpack.c.l.b16 %v751
      %v781 = vunpack.c.h.b16 %v751
      %v782 = vpack.c.b16 %v768, %v766
      %v783 = vpack.c.b16 %v769, %v767
      %v784 = vpack.c.b16 %v772, %v770
      %v785 = vpack.c.b16 %v773, %v771
      %v786 = vpack.c.b16 %v776, %v774
      %v787 = vpack.c.b16 %v777, %v775
      %v788 = vpack.c.b16 %v780, %v778
      %v789 = vpack.c.b16 %v781, %v779
      %vm798 = vcmask 523264
      %v800 = vsel %vm798, %v741, 0
      %v803 = vsel %vm798, %v742, 0
      %v806 = vsel %vm798, %v743, 0
      %808 = vmatpush.bf16.msra.mxu0 0
      %809 = vmatpush.bf16.msra.mxu0 0
      %810 = vmatpush.bf16.msra.mxu0 0
      %811 = vmatpush.bf16.msra.mxu0 0
      %812 = vmatpush.bf16.msra.mxu0 %v788
      %813 = vmatpush.bf16.msra.mxu0 %v786
      %814 = vmatpush.bf16.msra.mxu0 %v784
      %815 = vmatpush.bf16.msra.mxu0 %v782
      %816 = vmatmul.bf16.gmra.mxu0 %v800
      %v817 = vpop.f32.mrf.mxu0
      %v818 = vadd.f32 %v754, %v817
      %v819 = vpop.f32.mrf.mxu0
      %v820 = vadd.f32 %v754, %v819
      %821 = vmatmul.bf16.gmra.mxu0 %v803
      %v822 = vpop.f32.mrf.mxu0
      %v823 = vadd.f32 %v754, %v822
      %v824 = vpop.f32.mrf.mxu0
      %v825 = vadd.f32 %v754, %v824
      %826 = vmatmul.bf16.gmra.mxu0 %v806
      %v827 = vpop.f32.mrf.mxu0
      %v828 = vadd.f32 %v754, %v827
      %v829 = vpop.f32.mrf.mxu0
      %v830 = vadd.f32 %v754, %v829
      %831 = vdwg.mxu0
      %832 = vmatpush.bf16.msra.mxu0 0
      %833 = vmatpush.bf16.msra.mxu0 0
      %834 = vmatpush.bf16.msra.mxu0 0
      %835 = vmatpush.bf16.msra.mxu0 0
      %836 = vmatpush.bf16.msra.mxu0 %v789
      %837 = vmatpush.bf16.msra.mxu0 %v787
      %838 = vmatpush.bf16.msra.mxu0 %v785
      %839 = vmatpush.bf16.msra.mxu0 %v783
      %840 = vmatmul.bf16.gmra.mxu0 %v800
      %v841 = vpop.f32.mrf.mxu0
      %v842 = vadd.f32 %v755, %v841
      %v843 = vpop.f32.mrf.mxu0
      %v844 = vadd.f32 %v755, %v843
      %845 = vmatmul.bf16.gmra.mxu0 %v803
      %v846 = vpop.f32.mrf.mxu0
      %v847 = vadd.f32 %v755, %v846
      %v848 = vpop.f32.mrf.mxu0
      %v849 = vadd.f32 %v755, %v848
      %850 = vmatmul.bf16.gmra.mxu0 %v806
      %v851 = vpop.f32.mrf.mxu0
      %v852 = vadd.f32 %v755, %v851
      %v853 = vpop.f32.mrf.mxu0
      %v854 = vadd.f32 %v755, %v853
      %855 = vdwg.mxu0
      %v856 = vmul.f32 %v818, 0.25
      %v857 = vmul.f32 %v820, 0.25
      %v858 = vmul.f32 %v823, 0.25
      %v859 = vmul.f32 %v825, 0.25
      %v860 = vmul.f32 %v828, 0.25
      %v861 = vmul.f32 %v830, 0.25
      %868 = vrot.lane.b32.xlu0 %v818, 64
      %v869 = vpop.permute.xlu0 %868
      %870 = vrot.lane.b32.xlu0 %v820, 64
      %v871 = vpop.permute.xlu0 %870
      %872 = vrot.lane.b32.xlu0 %v823, 64
      %v873 = vpop.permute.xlu0 %872
      %874 = vrot.lane.b32.xlu0 %v825, 64
      %v875 = vpop.permute.xlu0 %874
      %876 = vrot.lane.b32.xlu0 %v828, 64
      %v877 = vpop.permute.xlu0 %876
      %878 = vrot.lane.b32.xlu0 %v830, 64
      %v879 = vpop.permute.xlu0 %878
      %886 = vst.msk [vmem:[#allocation2] sm:$0xff] %vm798, %v869
      %887 = vst.msk [vmem:[#allocation2 + $0x8] sm:$0xff] %vm798, %v871
      %888 = vst.msk [vmem:[#allocation2 + $0x10] sm:$0xff] %vm798, %v873
      %889 = vst.msk [vmem:[#allocation2 + $0x18] sm:$0xff] %vm798, %v875
      %890 = vst.msk [vmem:[#allocation2 + $0x20] sm:$0xff] %vm798, %v877
      %891 = vst.msk [vmem:[#allocation2 + $0x28] sm:$0xff] %vm798, %v879
      %892 = vst.msk [vmem:[#allocation3] sm:$0xff] %vm798, %v842
      %893 = vst.msk [vmem:[#allocation3 + $0x8] sm:$0xff] %vm798, %v844
      %894 = vst.msk [vmem:[#allocation3 + $0x10] sm:$0xff] %vm798, %v847
      %895 = vst.msk [vmem:[#allocation3 + $0x18] sm:$0xff] %vm798, %v849
      %896 = vst.msk [vmem:[#allocation3 + $0x20] sm:$0xff] %vm798, %v852
      %897 = vst.msk [vmem:[#allocation3 + $0x28] sm:$0xff] %vm798, %v854
      loop: start=0, step=1, limit=2
      $region85: #{vit_forward.4} parent=79 // loop_pre_header
        _
      $region86: #{vit_forward.4} parent=79 // loop_header
        %s899 = sphi 0, %s903
        %p900 = scmp.ge.s32.totalorder %s899, 2
        %v904 = vphi -1e+30, %v997
        %v905 = vphi -1e+30, %v998
        %v906 = vphi -1e+30, %v999
        %v907 = vphi -1e+30, %v1000
        %v908 = vphi -1e+30, %v1001
        %v909 = vphi -1e+30, %v1002
        %v910 = vphi 0.0, %v1045
        %v911 = vphi 0.0, %v1046
        %v912 = vphi 0.0, %v1047
        %v913 = vphi 0.0, %v1048
        %v914 = vphi 0.0, %v1049
        %v915 = vphi 0.0, %v1050
        %v916 = vphi 0.0, %v1140
        %v917 = vphi 0.0, %v1141
        %v918 = vphi 0.0, %v1142
        %v919 = vphi 0.0, %v1143
        %v920 = vphi 0.0, %v1144
        %v921 = vphi 0.0, %v1145
      $region87: #{vit_forward.4} parent=79 // loop_header_branch
        %902 = sbr.rel (%p900) target = $region91
      $region88: #{vit_forward.4} parent=79 // loop_body
        %s922 = smul.u32 %s899, 24
        %s923 = scalar_lea.vmem [#allocation2], %s922
        %v924 = vld [vmem:[%s923] sm:$0xff]
        %v925 = vld [vmem:[%s923 + $0x8] sm:$0xff]
        %v926 = vld [vmem:[%s923 + $0x10] sm:$0xff]
        %s927 = scalar_lea.vmem [#allocation3], %s922
        %v928 = vld [vmem:[%s927] sm:$0xff]
        %v929 = vld [vmem:[%s927 + $0x8] sm:$0xff]
        %v930 = vld [vmem:[%s927 + $0x10] sm:$0xff]
        %v931 = vmul.f32 %v856, %v924
        %v932 = vmul.f32 %v857, %v925
        %v933 = vmul.f32 %v858, %v926
        %v934 = vmul.f32 %v859, %v924
        %v935 = vmul.f32 %v860, %v925
        %v936 = vmul.f32 %v861, %v926
        %v937 = vpack.c.bf16 %v932, %v931
        %v938 = vpack.c.bf16 %v934, %v933
        %v939 = vpack.c.bf16 %v936, %v935
        %v948 = vunpack.c.l.b16 %v732
        %v949 = vunpack.c.l.b16 %v733
        %v950 = vunpack.c.l.b16 %v734
        %v951 = vunpack.c.l.b16 %v735
        %v952 = vunpack.c.l.b16 %v736
        %v953 = vunpack.c.l.b16 %v737
        %v954 = vunpack.c.l.b16 %v738
        %v955 = vunpack.c.l.b16 %v739
        %v956 = vpack.c.b16 %v949, %v948
        %v957 = vpack.c.b16 %v951, %v950
        %v958 = vpack.c.b16 %v953, %v952
        %v959 = vpack.c.b16 %v955, %v954
        %v965 = vsel %vm798, %v937, 0
        %v968 = vsel %vm798, %v938, 0
        %v971 = vsel %vm798, %v939, 0
        %973 = vmatpush.bf16.msra.mxu0 0
        %974 = vmatpush.bf16.msra.mxu0 0
        %975 = vmatpush.bf16.msra.mxu0 0
        %976 = vmatpush.bf16.msra.mxu0 0
        %977 = vmatpush.bf16.msra.mxu0 %v959
        %978 = vmatpush.bf16.msra.mxu0 %v958
        %979 = vmatpush.bf16.msra.mxu0 %v957
        %980 = vmatpush.bf16.msra.mxu0 %v956
        %981 = vmatmul.bf16.gmra.mxu0 %v965
        %v982 = vpop.f32.mrf.mxu0
        %v983 = vadd.f32 0.0, %v982
        %v984 = vpop.f32.mrf.mxu0
        %v985 = vadd.f32 0.0, %v984
        %986 = vmatmul.bf16.gmra.mxu0 %v968
        %v987 = vpop.f32.mrf.mxu0
        %v988 = vadd.f32 0.0, %v987
        %v989 = vpop.f32.mrf.mxu0
        %v990 = vadd.f32 0.0, %v989
        %991 = vmatmul.bf16.gmra.mxu0 %v971
        %v992 = vpop.f32.mrf.mxu0
        %v993 = vadd.f32 0.0, %v992
        %v994 = vpop.f32.mrf.mxu0
        %v995 = vadd.f32 0.0, %v994
        %996 = vdwg.mxu0
        %v997 = vmax.f32 %v904, %v983
        %v998 = vmax.f32 %v905, %v985
        %v999 = vmax.f32 %v906, %v988
        %v1000 = vmax.f32 %v907, %v990
        %v1001 = vmax.f32 %v908, %v993
        %v1002 = vmax.f32 %v909, %v995
        %v1003 = vsub.f32 %v904, %v997
        %v1004 = vsub.f32 %v905, %v998
        %v1005 = vsub.f32 %v906, %v999
        %v1006 = vsub.f32 %v907, %v1000
        %v1007 = vsub.f32 %v908, %v1001
        %v1008 = vsub.f32 %v909, %v1002
        %v1009 = vmul.f32 %v1003, 1.442695
        %v1010 = vpow.pop %v1009
        %v1011 = vmul.f32 %v1004, 1.442695
        %v1012 = vpow.pop %v1011
        %v1013 = vmul.f32 %v1005, 1.442695
        %v1014 = vpow.pop %v1013
        %v1015 = vmul.f32 %v1006, 1.442695
        %v1016 = vpow.pop %v1015
        %v1017 = vmul.f32 %v1007, 1.442695
        %v1018 = vpow.pop %v1017
        %v1019 = vmul.f32 %v1008, 1.442695
        %v1020 = vpow.pop %v1019
        %v1021 = vsub.f32 %v983, %v997
        %v1022 = vsub.f32 %v985, %v998
        %v1023 = vsub.f32 %v988, %v999
        %v1024 = vsub.f32 %v990, %v1000
        %v1025 = vsub.f32 %v993, %v1001
        %v1026 = vsub.f32 %v995, %v1002
        %v1027 = vmul.f32 %v1021, 1.442695
        %v1028 = vpow.pop %v1027
        %v1029 = vmul.f32 %v1022, 1.442695
        %v1030 = vpow.pop %v1029
        %v1031 = vmul.f32 %v1023, 1.442695
        %v1032 = vpow.pop %v1031
        %v1033 = vmul.f32 %v1024, 1.442695
        %v1034 = vpow.pop %v1033
        %v1035 = vmul.f32 %v1025, 1.442695
        %v1036 = vpow.pop %v1035
        %v1037 = vmul.f32 %v1026, 1.442695
        %v1038 = vpow.pop %v1037
        %v1039 = vmul.f32 %v1010, %v910
        %v1040 = vmul.f32 %v1012, %v911
        %v1041 = vmul.f32 %v1014, %v912
        %v1042 = vmul.f32 %v1016, %v913
        %v1043 = vmul.f32 %v1018, %v914
        %v1044 = vmul.f32 %v1020, %v915
        %v1045 = vadd.f32 %v1039, %v1028
        %v1046 = vadd.f32 %v1040, %v1030
        %v1047 = vadd.f32 %v1041, %v1032
        %v1048 = vadd.f32 %v1042, %v1034
        %v1049 = vadd.f32 %v1043, %v1036
        %v1050 = vadd.f32 %v1044, %v1038
        %v1051 = vpack.c.bf16 %v1012, %v1010
        %v1052 = vpack.c.bf16 %v1016, %v1014
        %v1053 = vpack.c.bf16 %v1020, %v1018
        %vm1054 = vcmask 31744
        %v1056 = vsel %vm1054, %v1051, 0
        %v1059 = vsel %vm1054, %v1052, 0
        %v1062 = vsel %vm1054, %v1053, 0
        %vm1064 = vcmask 1041408
        %v1066 = vsel %vm1064, %v740, 0
        %1068 = vmatpush.bf16.msra.mxu0 0
        %1069 = vmatpush.bf16.msra.mxu0 0
        %1070 = vmatpush.bf16.msra.mxu0 0
        %1071 = vmatpush.bf16.msra.mxu0 0
        %1072 = vmatpush.bf16.msra.mxu0 0
        %1073 = vmatpush.bf16.msra.mxu0 0
        %1074 = vmatpush.bf16.msra.mxu0 0
        %1075 = vmatpush.bf16.msra.mxu0 %v1066
        %1076 = vmatmul.bf16.gmra.mxu0 %v1056
        %v1077 = vpop.f32.mrf.mxu0
        %v1078 = vadd.f32 0.0, %v1077
        %v1079 = vpop.f32.mrf.mxu0
        %v1080 = vadd.f32 0.0, %v1079
        %1081 = vmatmul.bf16.gmra.mxu0 %v1059
        %v1082 = vpop.f32.mrf.mxu0
        %v1083 = vadd.f32 0.0, %v1082
        %v1084 = vpop.f32.mrf.mxu0
        %v1085 = vadd.f32 0.0, %v1084
        %1086 = vmatmul.bf16.gmra.mxu0 %v1062
        %v1087 = vpop.f32.mrf.mxu0
        %v1088 = vadd.f32 0.0, %v1087
        %v1089 = vpop.f32.mrf.mxu0
        %v1090 = vadd.f32 0.0, %v1089
        %1091 = vdwg.mxu0
        %v1092 = vpack.c.bf16 %v1030, %v1028
        %v1093 = vpack.c.bf16 %v1034, %v1032
        %v1094 = vpack.c.bf16 %v1038, %v1036
        %v1096 = vsel %vm1054, %v1092, 0
        %v1099 = vsel %vm1054, %v1093, 0
        %v1102 = vsel %vm1054, %v1094, 0
        %1104 = vmatpush.bf16.msra.mxu0 0
        %1105 = vmatpush.bf16.msra.mxu0 0
        %1106 = vmatpush.bf16.msra.mxu0 0
        %1107 = vmatpush.bf16.msra.mxu0 0
        %1108 = vmatpush.bf16.msra.mxu0 0
        %1109 = vmatpush.bf16.msra.mxu0 0
        %1110 = vmatpush.bf16.msra.mxu0 0
        %1111 = vmatpush.bf16.msra.mxu0 %v1066
        %1112 = vmatmul.bf16.gmra.mxu0 %v1096
        %v1113 = vpop.f32.mrf.mxu0
        %v1114 = vadd.f32 0.0, %v1113
        %v1115 = vpop.f32.mrf.mxu0
        %v1116 = vadd.f32 0.0, %v1115
        %1117 = vmatmul.bf16.gmra.mxu0 %v1099
        %v1118 = vpop.f32.mrf.mxu0
        %v1119 = vadd.f32 0.0, %v1118
        %v1120 = vpop.f32.mrf.mxu0
        %v1121 = vadd.f32 0.0, %v1120
        %1122 = vmatmul.bf16.gmra.mxu0 %v1102
        %v1123 = vpop.f32.mrf.mxu0
        %v1124 = vadd.f32 0.0, %v1123
        %v1125 = vpop.f32.mrf.mxu0
        %v1126 = vadd.f32 0.0, %v1125
        %1127 = vdwg.mxu0
        %v1128 = vmul.f32 %v1078, %v916
        %v1129 = vmul.f32 %v1080, %v917
        %v1130 = vmul.f32 %v1083, %v918
        %v1131 = vmul.f32 %v1085, %v919
        %v1132 = vmul.f32 %v1088, %v920
        %v1133 = vmul.f32 %v1090, %v921
        %v1134 = vmul.f32 %v1114, %v928
        %v1135 = vmul.f32 %v1116, %v929
        %v1136 = vmul.f32 %v1119, %v930
        %v1137 = vmul.f32 %v1121, %v928
        %v1138 = vmul.f32 %v1124, %v929
        %v1139 = vmul.f32 %v1126, %v930
        %v1140 = vadd.f32 %v1128, %v1134
        %v1141 = vadd.f32 %v1129, %v1135
        %v1142 = vadd.f32 %v1130, %v1136
        %v1143 = vadd.f32 %v1131, %v1137
        %v1144 = vadd.f32 %v1132, %v1138
        %v1145 = vadd.f32 %v1133, %v1139
      $region89: #{vit_forward.4} parent=79 // loop_footer
        %s903 = sadd.s32 1, %s899
      $region90: #{vit_forward.4} parent=79 // loop_footer_branch
        %898 = sbr.rel target = $region86
      $region91: #{vit_forward.4} parent=79 // loop_exit
        _
      %v1146 = vpack.c.bf16 %v911, %v910
      %v1147 = vpack.c.bf16 %v913, %v912
      %v1148 = vpack.c.bf16 %v915, %v914
      %vm1149 = vcmask 31744
      %v1151 = vsel %vm1149, %v1146, 0
      %v1154 = vsel %vm1149, %v1147, 0
      %v1157 = vsel %vm1149, %v1148, 0
      %vm1159 = vcmask 1041408
      %v1161 = vsel %vm1159, %v740, 0
      %1163 = vmatpush.bf16.msra.mxu0 0
      %1164 = vmatpush.bf16.msra.mxu0 0
      %1165 = vmatpush.bf16.msra.mxu0 0
      %1166 = vmatpush.bf16.msra.mxu0 0
      %1167 = vmatpush.bf16.msra.mxu0 0
      %1168 = vmatpush.bf16.msra.mxu0 0
      %1169 = vmatpush.bf16.msra.mxu0 0
      %1170 = vmatpush.bf16.msra.mxu0 %v1161
      %1171 = vmatmul.bf16.gmra.mxu0 %v1151
      %v1172 = vpop.f32.mrf.mxu0
      %v1173 = vadd.f32 0.0, %v1172
      %v1174 = vpop.f32.mrf.mxu0
      %v1175 = vadd.f32 0.0, %v1174
      %1176 = vmatmul.bf16.gmra.mxu0 %v1154
      %v1177 = vpop.f32.mrf.mxu0
      %v1178 = vadd.f32 0.0, %v1177
      %v1179 = vpop.f32.mrf.mxu0
      %v1180 = vadd.f32 0.0, %v1179
      %1181 = vmatmul.bf16.gmra.mxu0 %v1157
      %v1182 = vpop.f32.mrf.mxu0
      %v1183 = vadd.f32 0.0, %v1182
      %v1184 = vpop.f32.mrf.mxu0
      %v1185 = vadd.f32 0.0, %v1184
      %1186 = vdwg.mxu0
      %v1187 = vrcp.pop %v1173
      %v1188 = vmul.f32 %v1173, %v1187
      %v1189 = vsub.f32 1.0, %v1188
      %v1190 = vmul.f32 %v1187, %v1189
      %v1191 = vadd.f32 %v1187, %v1190
      %vm1192 = vweird.f32 %v1173
      %vm1193 = vweird.f32 %v1187
      %vm1194 = vmor %vm1192, %vm1193
      %v1195 = vsel %vm1194, %v1187, %v1191
      %v1196 = vand.u32 2147483647, %v1173
      %vm1197 = vcmp.eq.f32.partialorder %v1196, 8.507059e+37
      %v1198 = vand.u32 %v1173, 2147483648
      %v1199 = vor.u32 1.1754944e-38, %v1198
      %v1200 = vsel %vm1197, %v1199, %v1195
      %v1201 = vmul.f32 %v916, %v1200
      %v1202 = vrcp.pop %v1175
      %v1203 = vmul.f32 %v1175, %v1202
      %v1204 = vsub.f32 1.0, %v1203
      %v1205 = vmul.f32 %v1202, %v1204
      %v1206 = vadd.f32 %v1202, %v1205
      %vm1207 = vweird.f32 %v1175
      %vm1208 = vweird.f32 %v1202
      %vm1209 = vmor %vm1207, %vm1208
      %v1210 = vsel %vm1209, %v1202, %v1206
      %v1211 = vand.u32 2147483647, %v1175
      %vm1212 = vcmp.eq.f32.partialorder %v1211, 8.507059e+37
      %v1213 = vand.u32 %v1175, 2147483648
      %v1214 = vor.u32 1.1754944e-38, %v1213
      %v1215 = vsel %vm1212, %v1214, %v1210
      %v1216 = vmul.f32 %v917, %v1215
      %v1217 = vrcp.pop %v1178
      %v1218 = vmul.f32 %v1178, %v1217
      %v1219 = vsub.f32 1.0, %v1218
      %v1220 = vmul.f32 %v1217, %v1219
      %v1221 = vadd.f32 %v1217, %v1220
      %vm1222 = vweird.f32 %v1178
      %vm1223 = vweird.f32 %v1217
      %vm1224 = vmor %vm1222, %vm1223
      %v1225 = vsel %vm1224, %v1217, %v1221
      %v1226 = vand.u32 2147483647, %v1178
      %vm1227 = vcmp.eq.f32.partialorder %v1226, 8.507059e+37
      %v1228 = vand.u32 %v1178, 2147483648
      %v1229 = vor.u32 1.1754944e-38, %v1228
      %v1230 = vsel %vm1227, %v1229, %v1225
      %v1231 = vmul.f32 %v918, %v1230
      %v1232 = vrcp.pop %v1180
      %v1233 = vmul.f32 %v1180, %v1232
      %v1234 = vsub.f32 1.0, %v1233
      %v1235 = vmul.f32 %v1232, %v1234
      %v1236 = vadd.f32 %v1232, %v1235
      %vm1237 = vweird.f32 %v1180
      %vm1238 = vweird.f32 %v1232
      %vm1239 = vmor %vm1237, %vm1238
      %v1240 = vsel %vm1239, %v1232, %v1236
      %v1241 = vand.u32 2147483647, %v1180
      %vm1242 = vcmp.eq.f32.partialorder %v1241, 8.507059e+37
      %v1243 = vand.u32 %v1180, 2147483648
      %v1244 = vor.u32 1.1754944e-38, %v1243
      %v1245 = vsel %vm1242, %v1244, %v1240
      %v1246 = vmul.f32 %v919, %v1245
      %v1247 = vrcp.pop %v1183
      %v1248 = vmul.f32 %v1183, %v1247
      %v1249 = vsub.f32 1.0, %v1248
      %v1250 = vmul.f32 %v1247, %v1249
      %v1251 = vadd.f32 %v1247, %v1250
      %vm1252 = vweird.f32 %v1183
      %vm1253 = vweird.f32 %v1247
      %vm1254 = vmor %vm1252, %vm1253
      %v1255 = vsel %vm1254, %v1247, %v1251
      %v1256 = vand.u32 2147483647, %v1183
      %vm1257 = vcmp.eq.f32.partialorder %v1256, 8.507059e+37
      %v1258 = vand.u32 %v1183, 2147483648
      %v1259 = vor.u32 1.1754944e-38, %v1258
      %v1260 = vsel %vm1257, %v1259, %v1255
      %v1261 = vmul.f32 %v920, %v1260
      %v1262 = vrcp.pop %v1185
      %v1263 = vmul.f32 %v1185, %v1262
      %v1264 = vsub.f32 1.0, %v1263
      %v1265 = vmul.f32 %v1262, %v1264
      %v1266 = vadd.f32 %v1262, %v1265
      %vm1267 = vweird.f32 %v1185
      %vm1268 = vweird.f32 %v1262
      %vm1269 = vmor %vm1267, %vm1268
      %v1270 = vsel %vm1269, %v1262, %v1266
      %v1271 = vand.u32 2147483647, %v1185
      %vm1272 = vcmp.eq.f32.partialorder %v1271, 8.507059e+37
      %v1273 = vand.u32 %v1185, 2147483648
      %v1274 = vor.u32 1.1754944e-38, %v1273
      %v1275 = vsel %vm1272, %v1274, %v1270
      %v1276 = vmul.f32 %v921, %v1275
      %v1277 = vpack.c.bf16 %v1216, %v1201
      %v1278 = vpack.c.bf16 %v1246, %v1231
      %v1279 = vpack.c.bf16 %v1276, %v1261
      %v1280 = vld [vmem:[%s669] sm:$0xf]
      %v1281 = vld [vmem:[%s669 + $0x4] sm:$0xf]
      %v1282 = vld [vmem:[%s669 + $0x8] sm:$0xf]
      %v1283 = vld [vmem:[%s669 + $0xc] sm:$0xf]
      %v1284 = vld [vmem:[%s669 + $0x10] sm:$0xf]
      %v1285 = vld [vmem:[%s669 + $0x14] sm:$0xf]
      %v1286 = vld [vmem:[%s669 + $0x18] sm:$0xf]
      %v1287 = vld [vmem:[%s669 + $0x1c] sm:$0xf]
      %v1288 = vld [vmem:[%s672] sm:$0x1]
      %v1290 = vperm.slane %v1288, 0
      %v1300 = vunpack.c.l.b16 %v1280
      %v1301 = vunpack.c.l.b16 %v1281
      %v1302 = vunpack.c.l.b16 %v1282
      %v1303 = vunpack.c.l.b16 %v1283
      %v1304 = vunpack.c.l.b16 %v1284
      %v1305 = vunpack.c.l.b16 %v1285
      %v1306 = vunpack.c.l.b16 %v1286
      %v1307 = vunpack.c.l.b16 %v1287
      %v1308 = vpack.c.b16 %v1301, %v1300
      %v1309 = vpack.c.b16 %v1303, %v1302
      %v1310 = vpack.c.b16 %v1305, %v1304
      %v1311 = vpack.c.b16 %v1307, %v1306
      %v1317 = vsel %vm798, %v1277, 0
      %v1320 = vsel %vm798, %v1278, 0
      %v1323 = vsel %vm798, %v1279, 0
      %1325 = vmatpush.bf16.msra.mxu0 0
      %1326 = vmatpush.bf16.msra.mxu0 0
      %1327 = vmatpush.bf16.msra.mxu0 0
      %1328 = vmatpush.bf16.msra.mxu0 0
      %1329 = vmatpush.bf16.msra.mxu0 %v1311
      %1330 = vmatpush.bf16.msra.mxu0 %v1310
      %1331 = vmatpush.bf16.msra.mxu0 %v1309
      %1332 = vmatpush.bf16.msra.mxu0 %v1308
      %1333 = vmatmul.bf16.gmra.mxu0 %v1317
      %v1334 = vpop.f32.mrf.mxu0
      %v1335 = vadd.f32 %v1290, %v1334
      %v1336 = vpop.f32.mrf.mxu0
      %v1337 = vadd.f32 %v1290, %v1336
      %1338 = vmatmul.bf16.gmra.mxu0 %v1320
      %v1339 = vpop.f32.mrf.mxu0
      %v1340 = vadd.f32 %v1290, %v1339
      %v1341 = vpop.f32.mrf.mxu0
      %v1342 = vadd.f32 %v1290, %v1341
      %1343 = vmatmul.bf16.gmra.mxu0 %v1323
      %v1344 = vpop.f32.mrf.mxu0
      %v1345 = vadd.f32 %v1290, %v1344
      %v1346 = vpop.f32.mrf.mxu0
      %v1347 = vadd.f32 %v1290, %v1346
      %1348 = vdwg.mxu0
      %v1349 = vadd.f32 %v726, %v1335
      %v1350 = vadd.f32 %v727, %v1337
      %v1351 = vadd.f32 %v728, %v1340
      %v1352 = vadd.f32 %v729, %v1342
      %v1353 = vadd.f32 %v730, %v1345
      %v1354 = vadd.f32 %v731, %v1347
      %v1355 = vsel %vm798, %v1349, 0.0
      %1356 = vadd.xlane.f32.xlu0 %v1355
      %v1357 = vpop.xlane.xlu0 %1356
      %v1358 = vsel %vm798, %v1350, 0.0
      %1359 = vadd.xlane.f32.xlu0 %v1358
      %v1360 = vpop.xlane.xlu0 %1359
      %v1361 = vsel %vm798, %v1351, 0.0
      %1362 = vadd.xlane.f32.xlu0 %v1361
      %v1363 = vpop.xlane.xlu0 %1362
      %v1364 = vsel %vm798, %v1352, 0.0
      %1365 = vadd.xlane.f32.xlu0 %v1364
      %v1366 = vpop.xlane.xlu0 %1365
      %v1367 = vsel %vm798, %v1353, 0.0
      %1368 = vadd.xlane.f32.xlu0 %v1367
      %v1369 = vpop.xlane.xlu0 %1368
      %v1370 = vsel %vm798, %v1354, 0.0
      %1371 = vadd.xlane.f32.xlu0 %v1370
      %v1372 = vpop.xlane.xlu0 %1371
      %v1373 = vrcp.pop 64.0
      %v1374 = vmul.f32 64.0, %v1373
      %v1375 = vsub.f32 1.0, %v1374
      %v1376 = vmul.f32 %v1373, %v1375
      %v1377 = vadd.f32 %v1373, %v1376
      %vm1378 = vweird.f32 %v1373
      %v1379 = vsel %vm1378, %v1373, %v1377
      %v1380 = vmul.f32 %v1357, %v1379
      %v1381 = vmul.f32 %v1360, %v1379
      %v1382 = vmul.f32 %v1363, %v1379
      %v1383 = vmul.f32 %v1366, %v1379
      %v1384 = vmul.f32 %v1369, %v1379
      %v1385 = vmul.f32 %v1372, %v1379
      %v1386 = vsub.f32 %v1349, %v1380
      %v1387 = vsub.f32 %v1350, %v1381
      %v1388 = vsub.f32 %v1351, %v1382
      %v1389 = vsub.f32 %v1352, %v1383
      %v1390 = vsub.f32 %v1353, %v1384
      %v1391 = vsub.f32 %v1354, %v1385
      %v1392 = vmul.f32 %v1386, %v1386
      %v1393 = vmul.f32 %v1387, %v1387
      %v1394 = vmul.f32 %v1388, %v1388
      %v1395 = vmul.f32 %v1389, %v1389
      %v1396 = vmul.f32 %v1390, %v1390
      %v1397 = vmul.f32 %v1391, %v1391
      %v1398 = vsel %vm798, %v1392, 0.0
      %1399 = vadd.xlane.f32.xlu0 %v1398
      %v1400 = vpop.xlane.xlu0 %1399
      %v1401 = vsel %vm798, %v1393, 0.0
      %1402 = vadd.xlane.f32.xlu0 %v1401
      %v1403 = vpop.xlane.xlu0 %1402
      %v1404 = vsel %vm798, %v1394, 0.0
      %1405 = vadd.xlane.f32.xlu0 %v1404
      %v1406 = vpop.xlane.xlu0 %1405
      %v1407 = vsel %vm798, %v1395, 0.0
      %1408 = vadd.xlane.f32.xlu0 %v1407
      %v1409 = vpop.xlane.xlu0 %1408
      %v1410 = vsel %vm798, %v1396, 0.0
      %1411 = vadd.xlane.f32.xlu0 %v1410
      %v1412 = vpop.xlane.xlu0 %1411
      %v1413 = vsel %vm798, %v1397, 0.0
      %1414 = vadd.xlane.f32.xlu0 %v1413
      %v1415 = vpop.xlane.xlu0 %1414
      %v1416 = vmul.f32 %v1400, %v1379
      %v1417 = vmul.f32 %v1403, %v1379
      %v1418 = vmul.f32 %v1406, %v1379
      %v1419 = vmul.f32 %v1409, %v1379
      %v1420 = vmul.f32 %v1412, %v1379
      %v1421 = vmul.f32 %v1415, %v1379
      %v1422 = vadd.f32 %v1416, 1e-05
      %v1423 = vadd.f32 %v1417, 1e-05
      %v1424 = vadd.f32 %v1418, 1e-05
      %v1425 = vadd.f32 %v1419, 1e-05
      %v1426 = vadd.f32 %v1420, 1e-05
      %v1427 = vadd.f32 %v1421, 1e-05
      %v1428 = vrsqrt.pop %v1422
      %v1429 = vmul.f32 %v1428, %v1422
      %v1430 = vmul.f32 %v1429, %v1428
      %v1431 = vmul.f32 0.5, %v1430
      %v1432 = vsub.f32 1.5, %v1431
      %v1433 = vmul.f32 %v1428, %v1432
      %vm1434 = vweird.f32 %v1422
      %vm1435 = vweird.f32 %v1428
      %vm1436 = vmor %vm1434, %vm1435
      %v1437 = vsel %vm1436, %v1428, %v1433
      %v1438 = vrsqrt.pop %v1423
      %v1439 = vmul.f32 %v1438, %v1423
      %v1440 = vmul.f32 %v1439, %v1438
      %v1441 = vmul.f32 0.5, %v1440
      %v1442 = vsub.f32 1.5, %v1441
      %v1443 = vmul.f32 %v1438, %v1442
      %vm1444 = vweird.f32 %v1423
      %vm1445 = vweird.f32 %v1438
      %vm1446 = vmor %vm1444, %vm1445
      %v1447 = vsel %vm1446, %v1438, %v1443
      %v1448 = vrsqrt.pop %v1424
      %v1449 = vmul.f32 %v1448, %v1424
      %v1450 = vmul.f32 %v1449, %v1448
      %v1451 = vmul.f32 0.5, %v1450
      %v1452 = vsub.f32 1.5, %v1451
      %v1453 = vmul.f32 %v1448, %v1452
      %vm1454 = vweird.f32 %v1424
      %vm1455 = vweird.f32 %v1448
      %vm1456 = vmor %vm1454, %vm1455
      %v1457 = vsel %vm1456, %v1448, %v1453
      %v1458 = vrsqrt.pop %v1425
      %v1459 = vmul.f32 %v1458, %v1425
      %v1460 = vmul.f32 %v1459, %v1458
      %v1461 = vmul.f32 0.5, %v1460
      %v1462 = vsub.f32 1.5, %v1461
      %v1463 = vmul.f32 %v1458, %v1462
      %vm1464 = vweird.f32 %v1425
      %vm1465 = vweird.f32 %v1458
      %vm1466 = vmor %vm1464, %vm1465
      %v1467 = vsel %vm1466, %v1458, %v1463
      %v1468 = vrsqrt.pop %v1426
      %v1469 = vmul.f32 %v1468, %v1426
      %v1470 = vmul.f32 %v1469, %v1468
      %v1471 = vmul.f32 0.5, %v1470
      %v1472 = vsub.f32 1.5, %v1471
      %v1473 = vmul.f32 %v1468, %v1472
      %vm1474 = vweird.f32 %v1426
      %vm1475 = vweird.f32 %v1468
      %vm1476 = vmor %vm1474, %vm1475
      %v1477 = vsel %vm1476, %v1468, %v1473
      %v1478 = vrsqrt.pop %v1427
      %v1479 = vmul.f32 %v1478, %v1427
      %v1480 = vmul.f32 %v1479, %v1478
      %v1481 = vmul.f32 0.5, %v1480
      %v1482 = vsub.f32 1.5, %v1481
      %v1483 = vmul.f32 %v1478, %v1482
      %vm1484 = vweird.f32 %v1427
      %vm1485 = vweird.f32 %v1478
      %vm1486 = vmor %vm1484, %vm1485
      %v1487 = vsel %vm1486, %v1478, %v1483
      %v1488 = vmul.f32 %v1386, %v1437
      %v1489 = vmul.f32 %v1387, %v1447
      %v1490 = vmul.f32 %v1388, %v1457
      %v1491 = vmul.f32 %v1389, %v1467
      %v1492 = vmul.f32 %v1390, %v1477
      %v1493 = vmul.f32 %v1391, %v1487
      %v1494 = vld [vmem:[%s675] sm:$0x1]
      %v1496 = vperm.slane %v1494, 0
      %v1498 = vmul.f32 %v1488, %v1496
      %v1499 = vmul.f32 %v1489, %v1496
      %v1500 = vmul.f32 %v1490, %v1496
      %v1501 = vmul.f32 %v1491, %v1496
      %v1502 = vmul.f32 %v1492, %v1496
      %v1503 = vmul.f32 %v1493, %v1496
      %v1504 = vld [vmem:[%s678] sm:$0x1]
      %v1506 = vperm.slane %v1504, 0
      %v1508 = vadd.f32 %v1498, %v1506
      %v1509 = vadd.f32 %v1499, %v1506
      %v1510 = vadd.f32 %v1500, %v1506
      %v1511 = vadd.f32 %v1501, %v1506
      %v1512 = vadd.f32 %v1502, %v1506
      %v1513 = vadd.f32 %v1503, %v1506
      %v1514 = vpack.c.bf16 %v1509, %v1508
      %v1515 = vpack.c.bf16 %v1511, %v1510
      %v1516 = vpack.c.bf16 %v1513, %v1512
      %v1517 = vld [vmem:[%s683] sm:$0xff]
      %v1518 = vld [vmem:[%s683 + $0x8] sm:$0xff]
      %v1519 = vld [vmem:[%s683 + $0x10] sm:$0xff]
      %v1520 = vld [vmem:[%s683 + $0x18] sm:$0xff]
      %v1521 = vld [vmem:[%s683 + $0x20] sm:$0xff]
      %v1522 = vld [vmem:[%s683 + $0x28] sm:$0xff]
      %v1523 = vld [vmem:[%s683 + $0x30] sm:$0xff]
      %v1524 = vld [vmem:[%s683 + $0x38] sm:$0xff]
      %v1525 = vld [vmem:[%s687] sm:$0x3]
      %v1527 = vperm.slane %v1525, 0
      %v1528 = vperm.slane %v1525, 1
      %v1539 = vunpack.c.l.b16 %v1517
      %v1540 = vunpack.c.h.b16 %v1517
      %v1541 = vunpack.c.l.b16 %v1518
      %v1542 = vunpack.c.h.b16 %v1518
      %v1543 = vunpack.c.l.b16 %v1519
      %v1544 = vunpack.c.h.b16 %v1519
      %v1545 = vunpack.c.l.b16 %v1520
      %v1546 = vunpack.c.h.b16 %v1520
      %v1547 = vunpack.c.l.b16 %v1521
      %v1548 = vunpack.c.h.b16 %v1521
      %v1549 = vunpack.c.l.b16 %v1522
      %v1550 = vunpack.c.h.b16 %v1522
      %v1551 = vunpack.c.l.b16 %v1523
      %v1552 = vunpack.c.h.b16 %v1523
      %v1553 = vunpack.c.l.b16 %v1524
      %v1554 = vunpack.c.h.b16 %v1524
      %v1555 = vpack.c.b16 %v1541, %v1539
      %v1556 = vpack.c.b16 %v1542, %v1540
      %v1557 = vpack.c.b16 %v1545, %v1543
      %v1558 = vpack.c.b16 %v1546, %v1544
      %v1559 = vpack.c.b16 %v1549, %v1547
      %v1560 = vpack.c.b16 %v1550, %v1548
      %v1561 = vpack.c.b16 %v1553, %v1551
      %v1562 = vpack.c.b16 %v1554, %v1552
      %v1572 = vsel %vm798, %v1514, 0
      %v1575 = vsel %vm798, %v1515, 0
      %v1578 = vsel %vm798, %v1516, 0
      %1580 = vmatpush.bf16.msra.mxu0 0
      %1581 = vmatpush.bf16.msra.mxu0 0
      %1582 = vmatpush.bf16.msra.mxu0 0
      %1583 = vmatpush.bf16.msra.mxu0 0
      %1584 = vmatpush.bf16.msra.mxu0 %v1561
      %1585 = vmatpush.bf16.msra.mxu0 %v1559
      %1586 = vmatpush.bf16.msra.mxu0 %v1557
      %1587 = vmatpush.bf16.msra.mxu0 %v1555
      %1588 = vmatmul.bf16.gmra.mxu0 %v1572
      %v1589 = vpop.f32.mrf.mxu0
      %v1590 = vadd.f32 %v1527, %v1589
      %v1591 = vpop.f32.mrf.mxu0
      %v1592 = vadd.f32 %v1527, %v1591
      %1593 = vmatmul.bf16.gmra.mxu0 %v1575
      %v1594 = vpop.f32.mrf.mxu0
      %v1595 = vadd.f32 %v1527, %v1594
      %v1596 = vpop.f32.mrf.mxu0
      %v1597 = vadd.f32 %v1527, %v1596
      %1598 = vmatmul.bf16.gmra.mxu0 %v1578
      %v1599 = vpop.f32.mrf.mxu0
      %v1600 = vadd.f32 %v1527, %v1599
      %v1601 = vpop.f32.mrf.mxu0
      %v1602 = vadd.f32 %v1527, %v1601
      %1603 = vdwg.mxu0
      %1604 = vmatpush.bf16.msra.mxu0 0
      %1605 = vmatpush.bf16.msra.mxu0 0
      %1606 = vmatpush.bf16.msra.mxu0 0
      %1607 = vmatpush.bf16.msra.mxu0 0
      %1608 = vmatpush.bf16.msra.mxu0 %v1562
      %1609 = vmatpush.bf16.msra.mxu0 %v1560
      %1610 = vmatpush.bf16.msra.mxu0 %v1558
      %1611 = vmatpush.bf16.msra.mxu0 %v1556
      %1612 = vmatmul.bf16.gmra.mxu0 %v1572
      %v1613 = vpop.f32.mrf.mxu0
      %v1614 = vadd.f32 %v1528, %v1613
      %v1615 = vpop.f32.mrf.mxu0
      %v1616 = vadd.f32 %v1528, %v1615
      %1617 = vmatmul.bf16.gmra.mxu0 %v1575
      %v1618 = vpop.f32.mrf.mxu0
      %v1619 = vadd.f32 %v1528, %v1618
      %v1620 = vpop.f32.mrf.mxu0
      %v1621 = vadd.f32 %v1528, %v1620
      %1622 = vmatmul.bf16.gmra.mxu0 %v1578
      %v1623 = vpop.f32.mrf.mxu0
      %v1624 = vadd.f32 %v1528, %v1623
      %v1625 = vpop.f32.mrf.mxu0
      %v1626 = vadd.f32 %v1528, %v1625
      %1627 = vdwg.mxu0
      %v1628 = vmax.f32 %v1590, 0.0
      %v1629 = vmax.f32 %v1614, 0.0
      %v1630 = vmax.f32 %v1592, 0.0
      %v1631 = vmax.f32 %v1616, 0.0
      %v1632 = vmax.f32 %v1595, 0.0
      %v1633 = vmax.f32 %v1619, 0.0
      %v1634 = vmax.f32 %v1597, 0.0
      %v1635 = vmax.f32 %v1621, 0.0
      %v1636 = vmax.f32 %v1600, 0.0
      %v1637 = vmax.f32 %v1624, 0.0
      %v1638 = vmax.f32 %v1602, 0.0
      %v1639 = vmax.f32 %v1626, 0.0
      %v1640 = vpack.c.bf16 %v1630, %v1628
      %v1641 = vpack.c.bf16 %v1631, %v1629
      %v1642 = vpack.c.bf16 %v1634, %v1632
      %v1643 = vpack.c.bf16 %v1635, %v1633
      %v1644 = vpack.c.bf16 %v1638, %v1636
      %v1645 = vpack.c.bf16 %v1639, %v1637
      %v1646 = vld [vmem:[%s692] sm:$0xf]
      %v1647 = vld [vmem:[%s692 + $0x4] sm:$0xf]
      %v1648 = vld [vmem:[%s692 + $0x8] sm:$0xf]
      %v1649 = vld [vmem:[%s692 + $0xc] sm:$0xf]
      %v1650 = vld [vmem:[%s692 + $0x10] sm:$0xf]
      %v1651 = vld [vmem:[%s692 + $0x14] sm:$0xf]
      %v1652 = vld [vmem:[%s692 + $0x18] sm:$0xf]
      %v1653 = vld [vmem:[%s692 + $0x1c] sm:$0xf]
      %v1654 = vld [vmem:[%s692 + $0x20] sm:$0xf]
      %v1655 = vld [vmem:[%s692 + $0x24] sm:$0xf]
      %v1656 = vld [vmem:[%s692 + $0x28] sm:$0xf]
      %v1657 = vld [vmem:[%s692 + $0x2c] sm:$0xf]
      %v1658 = vld [vmem:[%s692 + $0x30] sm:$0xf]
      %v1659 = vld [vmem:[%s692 + $0x34] sm:$0xf]
      %v1660 = vld [vmem:[%s692 + $0x38] sm:$0xf]
      %v1661 = vld [vmem:[%s692 + $0x3c] sm:$0xf]
      %v1662 = vld [vmem:[%s692 + $0x40] sm:$0xf]
      %v1663 = vld [vmem:[%s692 + $0x44] sm:$0xf]
      %v1664 = vld [vmem:[%s692 + $0x48] sm:$0xf]
      %v1665 = vld [vmem:[%s692 + $0x4c] sm:$0xf]
      %v1666 = vld [vmem:[%s692 + $0x50] sm:$0xf]
      %v1667 = vld [vmem:[%s692 + $0x54] sm:$0xf]
      %v1668 = vld [vmem:[%s692 + $0x58] sm:$0xf]
      %v1669 = vld [vmem:[%s692 + $0x5c] sm:$0xf]
      %v1670 = vld [vmem:[%s692 + $0x60] sm:$0xf]
      %v1671 = vld [vmem:[%s692 + $0x64] sm:$0xf]
      %v1672 = vld [vmem:[%s692 + $0x68] sm:$0xf]
      %v1673 = vld [vmem:[%s692 + $0x6c] sm:$0xf]
      %v1674 = vld [vmem:[%s692 + $0x70] sm:$0xf]
      %v1675 = vld [vmem:[%s692 + $0x74] sm:$0xf]
      %v1676 = vld [vmem:[%s692 + $0x78] sm:$0xf]
      %v1677 = vld [vmem:[%s692 + $0x7c] sm:$0xf]
      %v1678 = vld [vmem:[%s695] sm:$0x1]
      %v1680 = vperm.slane %v1678, 0
      %v1714 = vunpack.c.l.b16 %v1646
      %v1715 = vunpack.c.l.b16 %v1647
      %v1716 = vunpack.c.l.b16 %v1648
      %v1717 = vunpack.c.l.b16 %v1649
      %v1718 = vunpack.c.l.b16 %v1650
      %v1719 = vunpack.c.l.b16 %v1651
      %v1720 = vunpack.c.l.b16 %v1652
      %v1721 = vunpack.c.l.b16 %v1653
      %v1722 = vunpack.c.l.b16 %v1654
      %v1723 = vunpack.c.l.b16 %v1655
      %v1724 = vunpack.c.l.b16 %v1656
      %v1725 = vunpack.c.l.b16 %v1657
      %v1726 = vunpack.c.l.b16 %v1658
      %v1727 = vunpack.c.l.b16 %v1659
      %v1728 = vunpack.c.l.b16 %v1660
      %v1729 = vunpack.c.l.b16 %v1661
      %v1730 = vunpack.c.l.b16 %v1662
      %v1731 = vunpack.c.l.b16 %v1663
      %v1732 = vunpack.c.l.b16 %v1664
      %v1733 = vunpack.c.l.b16 %v1665
      %v1734 = vunpack.c.l.b16 %v1666
      %v1735 = vunpack.c.l.b16 %v1667
      %v1736 = vunpack.c.l.b16 %v1668
      %v1737 = vunpack.c.l.b16 %v1669
      %v1738 = vunpack.c.l.b16 %v1670
      %v1739 = vunpack.c.l.b16 %v1671
      %v1740 = vunpack.c.l.b16 %v1672
      %v1741 = vunpack.c.l.b16 %v1673
      %v1742 = vunpack.c.l.b16 %v1674
      %v1743 = vunpack.c.l.b16 %v1675
      %v1744 = vunpack.c.l.b16 %v1676
      %v1745 = vunpack.c.l.b16 %v1677
      %v1746 = vpack.c.b16 %v1715, %v1714
      %v1747 = vpack.c.b16 %v1717, %v1716
      %v1748 = vpack.c.b16 %v1719, %v1718
      %v1749 = vpack.c.b16 %v1721, %v1720
      %v1750 = vpack.c.b16 %v1723, %v1722
      %v1751 = vpack.c.b16 %v1725, %v1724
      %v1752 = vpack.c.b16 %v1727, %v1726
      %v1753 = vpack.c.b16 %v1729, %v1728
      %v1754 = vpack.c.b16 %v1731, %v1730
      %v1755 = vpack.c.b16 %v1733, %v1732
      %v1756 = vpack.c.b16 %v1735, %v1734
      %v1757 = vpack.c.b16 %v1737, %v1736
      %v1758 = vpack.c.b16 %v1739, %v1738
      %v1759 = vpack.c.b16 %v1741, %v1740
      %v1760 = vpack.c.b16 %v1743, %v1742
      %v1761 = vpack.c.b16 %v1745, %v1744
      %1778 = vmatpush.bf16.msra.mxu0 %v1753
      %1779 = vmatpush.bf16.msra.mxu0 %v1752
      %1780 = vmatpush.bf16.msra.mxu0 %v1751
      %1781 = vmatpush.bf16.msra.mxu0 %v1750
      %1782 = vmatpush.bf16.msra.mxu0 %v1749
      %1783 = vmatpush.bf16.msra.mxu0 %v1748
      %1784 = vmatpush.bf16.msra.mxu0 %v1747
      %1785 = vmatpush.bf16.msra.mxu0 %v1746
      %1786 = vmatmul.bf16.gmra.mxu0 %v1640
      %v1787 = vpop.f32.mrf.mxu0
      %v1788 = vadd.f32 %v1680, %v1787
      %v1789 = vpop.f32.mrf.mxu0
      %v1790 = vadd.f32 %v1680, %v1789
      %1791 = vmatmul.bf16.gmra.mxu0 %v1642
      %v1792 = vpop.f32.mrf.mxu0
      %v1793 = vadd.f32 %v1680, %v1792
      %v1794 = vpop.f32.mrf.mxu0
      %v1795 = vadd.f32 %v1680, %v1794
      %1796 = vmatmul.bf16.gmra.mxu0 %v1644
      %v1797 = vpop.f32.mrf.mxu0
      %v1798 = vadd.f32 %v1680, %v1797
      %v1799 = vpop.f32.mrf.mxu0
      %v1800 = vadd.f32 %v1680, %v1799
      %1801 = vdwg.mxu0
      %1802 = vmatpush.bf16.msra.mxu0 %v1761
      %1803 = vmatpush.bf16.msra.mxu0 %v1760
      %1804 = vmatpush.bf16.msra.mxu0 %v1759
      %1805 = vmatpush.bf16.msra.mxu0 %v1758
      %1806 = vmatpush.bf16.msra.mxu0 %v1757
      %1807 = vmatpush.bf16.msra.mxu0 %v1756
      %1808 = vmatpush.bf16.msra.mxu0 %v1755
      %1809 = vmatpush.bf16.msra.mxu0 %v1754
      %1810 = vmatmul.bf16.gmra.mxu0 %v1641
      %v1811 = vpop.f32.mrf.mxu0
      %v1812 = vadd.f32 %v1788, %v1811
      %v1813 = vpop.f32.mrf.mxu0
      %v1814 = vadd.f32 %v1790, %v1813
      %1815 = vmatmul.bf16.gmra.mxu0 %v1643
      %v1816 = vpop.f32.mrf.mxu0
      %v1817 = vadd.f32 %v1793, %v1816
      %v1818 = vpop.f32.mrf.mxu0
      %v1819 = vadd.f32 %v1795, %v1818
      %1820 = vmatmul.bf16.gmra.mxu0 %v1645
      %v1821 = vpop.f32.mrf.mxu0
      %v1822 = vadd.f32 %v1798, %v1821
      %v1823 = vpop.f32.mrf.mxu0
      %v1824 = vadd.f32 %v1800, %v1823
      %1825 = vdwg.mxu0
      %v1826 = vadd.f32 %v1508, %v1812
      %v1827 = vadd.f32 %v1509, %v1814
      %v1828 = vadd.f32 %v1510, %v1817
      %v1829 = vadd.f32 %v1511, %v1819
      %v1830 = vadd.f32 %v1512, %v1822
      %v1831 = vadd.f32 %v1513, %v1824
      %v1832 = vsel %vm798, %v1826, 0.0
      %1833 = vadd.xlane.f32.xlu0 %v1832
      %v1834 = vpop.xlane.xlu0 %1833
      %v1835 = vsel %vm798, %v1827, 0.0
      %1836 = vadd.xlane.f32.xlu0 %v1835
      %v1837 = vpop.xlane.xlu0 %1836
      %v1838 = vsel %vm798, %v1828, 0.0
      %1839 = vadd.xlane.f32.xlu0 %v1838
      %v1840 = vpop.xlane.xlu0 %1839
      %v1841 = vsel %vm798, %v1829, 0.0
      %1842 = vadd.xlane.f32.xlu0 %v1841
      %v1843 = vpop.xlane.xlu0 %1842
      %v1844 = vsel %vm798, %v1830, 0.0
      %1845 = vadd.xlane.f32.xlu0 %v1844
      %v1846 = vpop.xlane.xlu0 %1845
      %v1847 = vsel %vm798, %v1831, 0.0
      %1848 = vadd.xlane.f32.xlu0 %v1847
      %v1849 = vpop.xlane.xlu0 %1848
      %v1850 = vmul.f32 %v1834, %v1379
      %v1851 = vmul.f32 %v1837, %v1379
      %v1852 = vmul.f32 %v1840, %v1379
      %v1853 = vmul.f32 %v1843, %v1379
      %v1854 = vmul.f32 %v1846, %v1379
      %v1855 = vmul.f32 %v1849, %v1379
      %v1856 = vsub.f32 %v1826, %v1850
      %v1857 = vsub.f32 %v1827, %v1851
      %v1858 = vsub.f32 %v1828, %v1852
      %v1859 = vsub.f32 %v1829, %v1853
      %v1860 = vsub.f32 %v1830, %v1854
      %v1861 = vsub.f32 %v1831, %v1855
      %v1862 = vmul.f32 %v1856, %v1856
      %v1863 = vmul.f32 %v1857, %v1857
      %v1864 = vmul.f32 %v1858, %v1858
      %v1865 = vmul.f32 %v1859, %v1859
      %v1866 = vmul.f32 %v1860, %v1860
      %v1867 = vmul.f32 %v1861, %v1861
      %v1868 = vsel %vm798, %v1862, 0.0
      %1869 = vadd.xlane.f32.xlu0 %v1868
      %v1870 = vpop.xlane.xlu0 %1869
      %v1871 = vsel %vm798, %v1863, 0.0
      %1872 = vadd.xlane.f32.xlu0 %v1871
      %v1873 = vpop.xlane.xlu0 %1872
      %v1874 = vsel %vm798, %v1864, 0.0
      %1875 = vadd.xlane.f32.xlu0 %v1874
      %v1876 = vpop.xlane.xlu0 %1875
      %v1877 = vsel %vm798, %v1865, 0.0
      %1878 = vadd.xlane.f32.xlu0 %v1877
      %v1879 = vpop.xlane.xlu0 %1878
      %v1880 = vsel %vm798, %v1866, 0.0
      %1881 = vadd.xlane.f32.xlu0 %v1880
      %v1882 = vpop.xlane.xlu0 %1881
      %v1883 = vsel %vm798, %v1867, 0.0
      %1884 = vadd.xlane.f32.xlu0 %v1883
      %v1885 = vpop.xlane.xlu0 %1884
      %v1886 = vmul.f32 %v1870, %v1379
      %v1887 = vmul.f32 %v1873, %v1379
      %v1888 = vmul.f32 %v1876, %v1379
      %v1889 = vmul.f32 %v1879, %v1379
      %v1890 = vmul.f32 %v1882, %v1379
      %v1891 = vmul.f32 %v1885, %v1379
      %v1892 = vadd.f32 %v1886, 1e-05
      %v1893 = vadd.f32 %v1887, 1e-05
      %v1894 = vadd.f32 %v1888, 1e-05
      %v1895 = vadd.f32 %v1889, 1e-05
      %v1896 = vadd.f32 %v1890, 1e-05
      %v1897 = vadd.f32 %v1891, 1e-05
      %v1898 = vrsqrt.pop %v1892
      %v1899 = vmul.f32 %v1898, %v1892
      %v1900 = vmul.f32 %v1899, %v1898
      %v1901 = vmul.f32 0.5, %v1900
      %v1902 = vsub.f32 1.5, %v1901
      %v1903 = vmul.f32 %v1898, %v1902
      %vm1904 = vweird.f32 %v1892
      %vm1905 = vweird.f32 %v1898
      %vm1906 = vmor %vm1904, %vm1905
      %v1907 = vsel %vm1906, %v1898, %v1903
      %v1908 = vrsqrt.pop %v1893
      %v1909 = vmul.f32 %v1908, %v1893
      %v1910 = vmul.f32 %v1909, %v1908
      %v1911 = vmul.f32 0.5, %v1910
      %v1912 = vsub.f32 1.5, %v1911
      %v1913 = vmul.f32 %v1908, %v1912
      %vm1914 = vweird.f32 %v1893
      %vm1915 = vweird.f32 %v1908
      %vm1916 = vmor %vm1914, %vm1915
      %v1917 = vsel %vm1916, %v1908, %v1913
      %v1918 = vrsqrt.pop %v1894
      %v1919 = vmul.f32 %v1918, %v1894
      %v1920 = vmul.f32 %v1919, %v1918
      %v1921 = vmul.f32 0.5, %v1920
      %v1922 = vsub.f32 1.5, %v1921
      %v1923 = vmul.f32 %v1918, %v1922
      %vm1924 = vweird.f32 %v1894
      %vm1925 = vweird.f32 %v1918
      %vm1926 = vmor %vm1924, %vm1925
      %v1927 = vsel %vm1926, %v1918, %v1923
      %v1928 = vrsqrt.pop %v1895
      %v1929 = vmul.f32 %v1928, %v1895
      %v1930 = vmul.f32 %v1929, %v1928
      %v1931 = vmul.f32 0.5, %v1930
      %v1932 = vsub.f32 1.5, %v1931
      %v1933 = vmul.f32 %v1928, %v1932
      %vm1934 = vweird.f32 %v1895
      %vm1935 = vweird.f32 %v1928
      %vm1936 = vmor %vm1934, %vm1935
      %v1937 = vsel %vm1936, %v1928, %v1933
      %v1938 = vrsqrt.pop %v1896
      %v1939 = vmul.f32 %v1938, %v1896
      %v1940 = vmul.f32 %v1939, %v1938
      %v1941 = vmul.f32 0.5, %v1940
      %v1942 = vsub.f32 1.5, %v1941
      %v1943 = vmul.f32 %v1938, %v1942
      %vm1944 = vweird.f32 %v1896
      %vm1945 = vweird.f32 %v1938
      %vm1946 = vmor %vm1944, %vm1945
      %v1947 = vsel %vm1946, %v1938, %v1943
      %v1948 = vrsqrt.pop %v1897
      %v1949 = vmul.f32 %v1948, %v1897
      %v1950 = vmul.f32 %v1949, %v1948
      %v1951 = vmul.f32 0.5, %v1950
      %v1952 = vsub.f32 1.5, %v1951
      %v1953 = vmul.f32 %v1948, %v1952
      %vm1954 = vweird.f32 %v1897
      %vm1955 = vweird.f32 %v1948
      %vm1956 = vmor %vm1954, %vm1955
      %v1957 = vsel %vm1956, %v1948, %v1953
      %v1958 = vmul.f32 %v1856, %v1907
      %v1959 = vmul.f32 %v1857, %v1917
      %v1960 = vmul.f32 %v1858, %v1927
      %v1961 = vmul.f32 %v1859, %v1937
      %v1962 = vmul.f32 %v1860, %v1947
      %v1963 = vmul.f32 %v1861, %v1957
      %v1964 = vld [vmem:[%s698] sm:$0x1]
      %v1966 = vperm.slane %v1964, 0
      %v1968 = vmul.f32 %v1958, %v1966
      %v1969 = vmul.f32 %v1959, %v1966
      %v1970 = vmul.f32 %v1960, %v1966
      %v1971 = vmul.f32 %v1961, %v1966
      %v1972 = vmul.f32 %v1962, %v1966
      %v1973 = vmul.f32 %v1963, %v1966
      %v1974 = vld [vmem:[%s701] sm:$0x1]
      %v1976 = vperm.slane %v1974, 0
      %v1978 = vadd.f32 %v1968, %v1976
      %v1979 = vadd.f32 %v1969, %v1976
      %v1980 = vadd.f32 %v1970, %v1976
      %v1981 = vadd.f32 %v1971, %v1976
      %v1982 = vadd.f32 %v1972, %v1976
      %v1983 = vadd.f32 %v1973, %v1976
      %1984 = vst.msk [vmem:[%s706] sm:$0xff] %vm798, %v1978
      %1985 = vst.msk [vmem:[%s706 + $0x8] sm:$0xff] %vm798, %v1979
      %1986 = vst.msk [vmem:[%s706 + $0x10] sm:$0xff] %vm798, %v1980
      %1987 = vst.msk [vmem:[%s706 + $0x18] sm:$0xff] %vm798, %v1981
      %1988 = vst.msk [vmem:[%s706 + $0x20] sm:$0xff] %vm798, %v1982
      %1989 = vst.msk [vmem:[%s706 + $0x28] sm:$0xff] %vm798, %v1983
      %s1990 = smul.u32 3, %s30
      %p1991 = scmp.lt.s32.totalorder %s1990, 2
      %s1992 = scalar_select %p1991, %s1990, 2
      %s1993 = smul.addr %s1992, 8
      %s1994 = scalar_lea.vmem %s15, %s1993
      // Predicated region
      $region92: #{vit_forward.4} parent=79 // pred_check
        %p1995 = pneg %p436
      $region93: #{vit_forward.4} parent=79 // pred_check_branch
        %1997 = sbr.rel (%p1995) target = $region95
      $region94: #{vit_forward.4} parent=79 // pred_region
        %s1998 = smul.u32 3, %s30
      $region95: #{vit_forward.4} parent=79 // pred_fallthru
        _
      // Predicated region
      $region96: #{vit_forward.4} parent=79 // pred_check
        %p1999 = pneg %p436
      $region97: #{vit_forward.4} parent=79 // pred_check_branch
        %2001 = sbr.rel (%p1999) target = $region99
      $region98: #{vit_forward.4} parent=79 // pred_region
        %s2002 = smul.u32 3, %s30
        %p2003 = scmp.lt.s32.totalorder %s2002, 2
        %s2004 = scalar_select %p2003, %s2002, 2
        %s2005 = smul.addr %s2004, 8
        %s2006 = scalar_lea.vmem %s15, %s2005
      $region99: #{vit_forward.4} parent=79 // pred_fallthru
        _
    $region80: #{vit_forward.4} parent=5 // pred_fallthru
      _
    %p2007 = scmp.le.s32.totalorder 2, %s21
    // Predicated region
    $region100: #{vit_forward.4} parent=5 // pred_check
      %p2008 = pneg %p2007
    $region101: #{vit_forward.4} parent=5 // pred_check_branch
      %2010 = sbr.rel (%p2008) target = $region103
    $region102: #{vit_forward.4} parent=5 // pred_region
      %s2011 = ssub.s32 %s21, 2
    $region103: #{vit_forward.4} parent=5 // pred_fallthru
      _
  $region6: #{vit_forward.4} parent=0 // loop_footer
    %s25 = sadd.s32 1, %s21
  $region7: #{vit_forward.4} parent=0 // loop_footer_branch
    %20 = sbr.rel target = $region3
  $region8: #{vit_forward.4} parent=0 // loop_exit
    _

</llo_original>
